<compile_context>
chip_gen: v7x
topology: tpu7x:2x2x1
jax: 0.10.0
libtpu: 0.0.40
codegen_flags: <defaults>
</compile_context>

<pallas_src>
import functools
import math

import jax
import jax.numpy as jnp
from jax.experimental import pallas as pl
from jax.experimental.pallas import tpu as pltpu

# ---- small, Gemma-like synthetic config ----
VOCAB = 64
HIDDEN = 64
LAYERS = 2
HEADS = 2
HEAD_DIM = 32          # HEADS * HEAD_DIM == HIDDEN
INTER = 128
EPS = 1e-6
ROPE_THETA = 10000.0
PAD_TOKEN_ID = 0
BATCH = 2
SEQ = 8
DTYPE = jnp.float32
WEIGHT_DTYPE = jnp.bfloat16      # MXU-native weight storage


# ----------------------------- fused model kernel -----------------------------

def _rmsnorm_f32(x, w):
    var = jnp.mean(x * x, axis=-1, keepdims=True)
    return x * jax.lax.rsqrt(var + EPS) * (1.0 + w)


def _model_kernel(h_ref, bias_ref, cos_ref, sin_ref,
                  in_norm_ref, wqkv_ref, wo_ref,
                  post_norm_ref, wgu_ref, wdown_ref, final_norm_ref,
                  o_ref, res_ref, *, heads, head_dim, inter, tokens):
    """One grid step == one decoder layer, operating on all B*S tokens."""
    layer = pl.program_id(0)

    @pl.when(layer == 0)
    def _():
        res_ref[...] = h_ref[...].astype(jnp.float32)

    x = res_ref[...]                                   # (T, H) fp32 residual
    bias = bias_ref[...]                               # (heads*T, heads*T) additive
    cos = cos_ref[...]                                 # (T, heads*head_dim)
    sin = sin_ref[...]

    hq = heads * head_dim
    d2 = head_dim // 2

    def rope_slab(t):
        # rotate-half RoPE on a lane-packed (T, heads*head_dim) slab;
        # cos/sin are pre-tiled to the same 64 lanes host-side.
        parts = []
        for hh in range(heads):
            lo = hh * head_dim
            parts.append(-t[:, lo + d2:lo + head_dim])
            parts.append(t[:, lo:lo + d2])
        return t * cos + jnp.concatenate(parts, axis=-1) * sin

    def stack_heads(t):
        # (T, heads*head_dim) -> (heads*T, head_dim): heads along sublanes.
        return jnp.concatenate(
            [t[:, hh * head_dim:(hh + 1) * head_dim] for hh in range(heads)],
            axis=0)

    # --- self-attention block ---
    xn = _rmsnorm_f32(x, in_norm_ref[...].astype(jnp.float32))
    qkv = jnp.dot(xn.astype(jnp.bfloat16), wqkv_ref[...],
                  preferred_element_type=jnp.float32)          # (T, 3*HQ)

    q = rope_slab(qkv[:, :hq])          # 1/sqrt(head_dim) folded into Wq columns
    k = rope_slab(qkv[:, hq:2 * hq])
    v = qkv[:, 2 * hq:]

    q_all = stack_heads(q).astype(jnp.bfloat16)                # (heads*T, D)
    k_all = stack_heads(k).astype(jnp.bfloat16)
    v_all = stack_heads(v).astype(jnp.bfloat16)

    # single block-diagonal score matmul over (head, batch)
    s = jnp.dot(q_all, k_all.T, preferred_element_type=jnp.float32) + bias
    m = jnp.max(s, axis=-1, keepdims=True)
    p = jnp.exp(s - m)
    p = p * pl.reciprocal(jnp.sum(p, axis=-1, keepdims=True), approx=True)
    ctx = jnp.dot(p.astype(jnp.bfloat16), v_all,
                  preferred_element_type=jnp.float32)          # (heads*T, D)

    # unstack heads back to a lane-packed (T, HQ) slab
    attn = jnp.concatenate(
        [ctx[hh * tokens:(hh + 1) * tokens, :] for hh in range(heads)], axis=-1)

    h2 = x + jnp.dot(attn.astype(jnp.bfloat16), wo_ref[...],
                     preferred_element_type=jnp.float32)

    # --- MLP block (GeGLU) ---
    xn2 = _rmsnorm_f32(h2, post_norm_ref[...].astype(jnp.float32))
    gu = jnp.dot(xn2.astype(jnp.bfloat16), wgu_ref[...],
                 preferred_element_type=jnp.float32)           # (T, 2*INTER)
    act = jax.nn.gelu(gu[:, :inter], approximate=True) * gu[:, inter:]
    out = h2 + jnp.dot(act.astype(jnp.bfloat16), wdown_ref[...],
                       preferred_element_type=jnp.float32)

    res_ref[...] = out

    @pl.when(layer == pl.num_programs(0) - 1)
    def _():
        # fused final model RMSNorm + (single) output store
        o_ref[...] = _rmsnorm_f32(
            out, final_norm_ref[...].astype(jnp.float32)).astype(o_ref.dtype)


# ----------------------------- wrapper / forward -----------------------------

def _rope_tables(seq_len):
    pos = jnp.arange(seq_len, dtype=jnp.float32)
    inv_freq = 1.0 / (
        ROPE_THETA ** (jnp.arange(0, HEAD_DIM, 2, dtype=jnp.float32) / HEAD_DIM)
    )
    freqs = pos[:, None] * inv_freq[None, :]
    emb = jnp.concatenate([freqs, freqs], axis=-1)
    return jnp.cos(emb).astype(DTYPE), jnp.sin(emb).astype(DTYPE)


def fuse_params(params):
    """One-time preprocessing: fuse+stack weights, fold the score scale, cast bf16."""
    scale = 1.0 / math.sqrt(HEAD_DIM)
    layers = params["layers"]

    def stack(key):
        return jnp.stack([lp[key] for lp in layers])

    wqkv = jnp.stack([
        jnp.concatenate([lp["wq"] * scale, lp["wk"], lp["wv"]], axis=1)
        for lp in layers])
    wgu = jnp.stack([
        jnp.concatenate([lp["w_gate"], lp["w_up"]], axis=1) for lp in layers])

    return {
        "embed": params["embed"],
        "input_norm": stack("input_norm"),                     # (L, 1, H) f32
        "wqkv": wqkv.astype(WEIGHT_DTYPE),                     # (L, H, 3*HQ) bf16
        "wo": stack("wo").astype(WEIGHT_DTYPE),                # (L, HQ, H)  bf16
        "post_norm": stack("post_norm"),                       # (L, 1, H) f32
        "w_gate_up": wgu.astype(WEIGHT_DTYPE),                 # (L, H, 2*INTER) bf16
        "w_down": stack("w_down").astype(WEIGHT_DTYPE),        # (L, INTER, H) bf16
        "final_norm": params["final_norm"],                    # (1, H) f32
    }


def gemma_forward(fused, input_ids, attention_mask):
    """Bidirectional (is_causal=False) Gemma forward. Returns last_hidden_state."""
    B, S = input_ids.shape
    T = B * S
    HQ = HEADS * HEAD_DIM

    # embedding + Gemma sqrt(hidden_size) input scaling (gather stays in XLA)
    h = jnp.take(fused["embed"], input_ids, axis=0).astype(DTYPE)
    h = (h * math.sqrt(HIDDEN)).reshape(T, HIDDEN)

    # RoPE tables tiled for the lane-packed (T, HQ) q/k slabs
    cos, sin = _rope_tables(S)                                  # (S, HEAD_DIM)
    cos = jnp.tile(jnp.tile(cos, (B, 1)), (1, HEADS))           # (T, HQ)
    sin = jnp.tile(jnp.tile(sin, (B, 1)), (1, HEADS))

    # block-diagonal additive bias over (head, batch): masks cross-batch,
    # cross-head and padded keys.  (heads*T)^2 is tiny at this size.
    min_val = jnp.finfo(DTYPE).min
    tok_b = jnp.tile(jnp.repeat(jnp.arange(B), S), HEADS)       # (heads*T,)
    tok_h = jnp.repeat(jnp.arange(HEADS), T)
    key_ok = jnp.tile(attention_mask.reshape(-1) > 0, HEADS)
    ok = ((tok_b[:, None] == tok_b[None, :])
          & (tok_h[:, None] == tok_h[None, :])
          & key_ok[None, :])
    bias = jnp.where(ok, 0.0, min_val).astype(DTYPE)            # (heads*T, heads*T)

    def const(shape):
        return pl.BlockSpec(shape, lambda l, _n=len(shape): (0,) * _n)

    def per_layer(shape):
        return pl.BlockSpec((None,) + shape,
                            lambda l, _n=len(shape): (l,) + (0,) * _n)

    kernel = functools.partial(
        _model_kernel, heads=HEADS, head_dim=HEAD_DIM, inter=INTER, tokens=T)

    out = pl.pallas_call(
        kernel,
        out_shape=jax.ShapeDtypeStruct((T, HIDDEN), DTYPE),
        grid=(LAYERS,),
        in_specs=[
            const((T, HIDDEN)),                 # initial hidden states
            const((HEADS * T, HEADS * T)),      # block-diag attention bias
            const((T, HQ)),                     # cos
            const((T, HQ)),                     # sin
            per_layer((1, HIDDEN)),             # input_layernorm
            per_layer((HIDDEN, 3 * HQ)),        # fused Wq|Wk|Wv (bf16)
            per_layer((HQ, HIDDEN)),            # Wo (bf16)
            per_layer((1, HIDDEN)),             # post-attention layernorm
            per_layer((HIDDEN, 2 * INTER)),     # fused Wgate|Wup (bf16)
            per_layer((INTER, HIDDEN)),         # Wdown (bf16)
            const((1, HIDDEN)),                 # final model norm
        ],
        out_specs=const((T, HIDDEN)),
        scratch_shapes=[pltpu.VMEM((T, HIDDEN), jnp.float32)],  # residual carry
        compiler_params=pltpu.CompilerParams(
            dimension_semantics=("arbitrary",)),                # sequential over layers
    )(h, bias, cos, sin,
      fused["input_norm"], fused["wqkv"], fused["wo"],
      fused["post_norm"], fused["w_gate_up"], fused["w_down"],
      fused["final_norm"])

    return out.reshape(B, S, HIDDEN)


# ----------------------------- reference (pure JAX, fp32) -----------------------------

def _ref_rmsnorm(x, w):
    xf = x.astype(jnp.float32)
    var = jnp.mean(xf * xf, axis=-1, keepdims=True)
    return (xf * jax.lax.rsqrt(var + EPS) * (1.0 + w.astype(jnp.float32))).astype(x.dtype)


def _ref_rope(x, cos, sin):
    d2 = x.shape[-1] // 2
    x1, x2 = x[..., :d2], x[..., d2:]
    rot = jnp.concatenate([-x2, x1], axis=-1)
    return x * cos + rot * sin


def gemma_forward_ref(params, input_ids, attention_mask):
    B, S = input_ids.shape
    h = jnp.take(params["embed"], input_ids, axis=0).astype(DTYPE)
    h = h * jnp.asarray(math.sqrt(HIDDEN), dtype=h.dtype)
    cos, sin = _rope_tables(S)
    min_val = jnp.finfo(DTYPE).min
    add_mask = (1.0 - attention_mask.astype(DTYPE))[:, None, None, :] * min_val
    add_mask = jnp.broadcast_to(add_mask, (B, 1, S, S)).astype(DTYPE)
    scale = 1.0 / math.sqrt(HEAD_DIM)

    for lp in params["layers"]:
        resid = h.reshape(B * S, HIDDEN)
        xn = _ref_rmsnorm(resid, lp["input_norm"])
        q = (xn @ lp["wq"]).reshape(B, S, HEADS, HEAD_DIM).transpose(0, 2, 1, 3)
        k = (xn @ lp["wk"]).reshape(B, S, HEADS, HEAD_DIM).transpose(0, 2, 1, 3)
        v = (xn @ lp["wv"]).reshape(B, S, HEADS, HEAD_DIM).transpose(0, 2, 1, 3)
        q = _ref_rope(q, cos, sin)
        k = _ref_rope(k, cos, sin)
        scores = jnp.einsum("bhqd,bhkd->bhqk", q, k) * scale + add_mask
        probs = jax.nn.softmax(scores, axis=-1)
        attn = jnp.einsum("bhqk,bhkd->bhqd", probs, v)
        attn = attn.transpose(0, 2, 1, 3).reshape(B * S, HEADS * HEAD_DIM)
        h2d = resid + attn @ lp["wo"]
        xn2 = _ref_rmsnorm(h2d, lp["post_norm"])
        g = jax.nn.gelu(xn2 @ lp["w_gate"], approximate=True)
        u = xn2 @ lp["w_up"]
        h2d = h2d + (g * u) @ lp["w_down"]
        h = h2d.reshape(B, S, HIDDEN)
    return _ref_rmsnorm(h.reshape(B * S, HIDDEN), params["final_norm"]).reshape(B, S, HIDDEN)


# ----------------------------- param init -----------------------------

def init_params(key):
    def normal(k, shape, std=0.02):
        return (std * jax.random.normal(k, shape, dtype=jnp.float32)).astype(DTYPE)

    keys = jax.random.split(key, 1 + LAYERS)
    embed = normal(keys[0], (VOCAB, HIDDEN))
    embed = embed.at[PAD_TOKEN_ID].set(0.0)  # nn.Embedding padding_idx row is zero

    layers = []
    for i in range(LAYERS):
        lk = jax.random.split(keys[1 + i], 9)
        layers.append({
            "input_norm": normal(lk[0], (1, HIDDEN)),
            "wq": normal(lk[1], (HIDDEN, HEADS * HEAD_DIM)),
            "wk": normal(lk[2], (HIDDEN, HEADS * HEAD_DIM)),
            "wv": normal(lk[3], (HIDDEN, HEADS * HEAD_DIM)),
            "wo": normal(lk[4], (HEADS * HEAD_DIM, HIDDEN)),
            "post_norm": normal(lk[5], (1, HIDDEN)),
            "w_gate": normal(lk[6], (HIDDEN, INTER)),
            "w_up": normal(lk[7], (HIDDEN, INTER)),
            "w_down": normal(lk[8], (INTER, HIDDEN)),
        })
    final_norm = normal(jax.random.PRNGKey(12345), (1, HIDDEN))
    return {"embed": embed, "layers": layers, "final_norm": final_norm}


# ----------------------------- main -----------------------------

if __name__ == "__main__":
    key = jax.random.PRNGKey(0)
    pkey, ikey = jax.random.split(key)
    params = init_params(pkey)

    input_ids = jax.random.randint(ikey, (BATCH, SEQ), 1, VOCAB, dtype=jnp.int32)
    # batch 0 fully valid; batch 1 has last 2 positions padded
    attention_mask = jnp.array(
        [[1] * SEQ, [1] * (SEQ - 2) + [0, 0]], dtype=jnp.int32
    )
    input_ids = jnp.where(attention_mask == 0, PAD_TOKEN_ID, input_ids)

    fused = fuse_params(params)  # one-time weight fusion / stacking / bf16 cast

    out = gemma_forward(fused, input_ids, attention_mask)
    out = jax.block_until_ready(out)

    ref = jax.block_until_ready(gemma_forward_ref(params, input_ids, attention_mask))
    assert out.shape == (BATCH, SEQ, HIDDEN)
    # bf16 MXU operands + approx reciprocal vs the fp32 reference: bf16-level tolerance.
    assert jnp.allclose(out, ref, atol=2e-2, rtol=2e-2), (
        f"max abs diff {jnp.max(jnp.abs(out - ref))}"
    )
    print("KERNEL_OK")
</pallas_src>

<mosaic_0001>
module attributes {stable_mosaic.version = 11 : i64} {
  func.func @_model_kernel(%arg0: i32, %arg1: memref<16x64xf32, #tpu.memory_space<vmem>>, %arg2: memref<32x32xf32, #tpu.memory_space<vmem>>, %arg3: memref<16x64xf32, #tpu.memory_space<vmem>>, %arg4: memref<16x64xf32, #tpu.memory_space<vmem>>, %arg5: memref<1x1x64xf32, #tpu.memory_space<vmem>>, %arg6: memref<1x64x192xbf16, #tpu.memory_space<vmem>>, %arg7: memref<1x64x64xbf16, #tpu.memory_space<vmem>>, %arg8: memref<1x1x64xf32, #tpu.memory_space<vmem>>, %arg9: memref<1x64x256xbf16, #tpu.memory_space<vmem>>, %arg10: memref<1x128x64xbf16, #tpu.memory_space<vmem>>, %arg11: memref<1x64xf32, #tpu.memory_space<vmem>>, %arg12: memref<16x64xf32, #tpu.memory_space<vmem>>, %arg13: memref<16x64xf32, #tpu.memory_space<vmem>>) attributes {dimension_semantics = [#tpu.dimension_semantics<arbitrary>], iteration_bounds = array<i64: 2>, scalar_prefetch = 0 : i64, scratch_operands = 1 : i64, tpu.core_type = #tpu.core_type<tc>, window_params = [{pipeline_mode = #tpu.pipeline_mode<synchronous>, transform_indices = @transform_0, window_bounds = array<i64: 16, 64>}, {pipeline_mode = #tpu.pipeline_mode<synchronous>, transform_indices = @transform_1, window_bounds = array<i64: 32, 32>}, {pipeline_mode = #tpu.pipeline_mode<synchronous>, transform_indices = @transform_2, window_bounds = array<i64: 16, 64>}, {pipeline_mode = #tpu.pipeline_mode<synchronous>, transform_indices = @transform_3, window_bounds = array<i64: 16, 64>}, {transform_indices = @transform_4, window_bounds = array<i64: 1, 1, 64>}, {transform_indices = @transform_5, window_bounds = array<i64: 1, 64, 192>}, {transform_indices = @transform_6, window_bounds = array<i64: 1, 64, 64>}, {transform_indices = @transform_7, window_bounds = array<i64: 1, 1, 64>}, {transform_indices = @transform_8, window_bounds = array<i64: 1, 64, 256>}, {transform_indices = @transform_9, window_bounds = array<i64: 1, 128, 64>}, {pipeline_mode = #tpu.pipeline_mode<synchronous>, transform_indices = @transform_10, window_bounds = array<i64: 1, 64>}, {pipeline_mode = #tpu.pipeline_mode<synchronous>, transform_indices = @transform_11, window_bounds = array<i64: 16, 64>}]} {
    %c0_i32 = arith.constant 0 : i32
    %0 = arith.cmpi eq, %arg0, %c0_i32 : i32
    %1 = arith.extui %0 : i1 to i32
    %c0_i32_0 = arith.constant 0 : i32
    %2 = arith.cmpi ne, %1, %c0_i32_0 : i32
    scf.if %2 {
      %c0_52 = arith.constant 0 : index
      %c0_53 = arith.constant 0 : index
      %134 = vector.load %arg1[%c0_52, %c0_53] : memref<16x64xf32, #tpu.memory_space<vmem>>, vector<16x64xf32>
      %c0_54 = arith.constant 0 : index
      %c0_55 = arith.constant 0 : index
      %135 = vector.load %arg13[%c0_54, %c0_55] : memref<16x64xf32, #tpu.memory_space<vmem>>, vector<16x64xf32>
      tpu.vector_store %arg13[%c0_54, %c0_55], %134 {strides = array<i32>} : memref<16x64xf32, #tpu.memory_space<vmem>>, vector<16x64xf32>,
    } else {
    }
    %c0 = arith.constant 0 : index
    %c0_1 = arith.constant 0 : index
    %3 = vector.load %arg13[%c0, %c0_1] : memref<16x64xf32, #tpu.memory_space<vmem>>, vector<16x64xf32>
    %c0_2 = arith.constant 0 : index
    %c0_3 = arith.constant 0 : index
    %4 = vector.load %arg2[%c0_2, %c0_3] : memref<32x32xf32, #tpu.memory_space<vmem>>, vector<32x32xf32>
    %c0_4 = arith.constant 0 : index
    %c0_5 = arith.constant 0 : index
    %5 = vector.load %arg3[%c0_4, %c0_5] : memref<16x64xf32, #tpu.memory_space<vmem>>, vector<16x64xf32>
    %c0_6 = arith.constant 0 : index
    %c0_7 = arith.constant 0 : index
    %6 = vector.load %arg4[%c0_6, %c0_7] : memref<16x64xf32, #tpu.memory_space<vmem>>, vector<16x64xf32>
    %c0_8 = arith.constant 0 : index
    %c0_9 = arith.constant 0 : index
    %c0_10 = arith.constant 0 : index
    %7 = vector.load %arg5[%c0_8, %c0_9, %c0_10] : memref<1x1x64xf32, #tpu.memory_space<vmem>>, vector<1x1x64xf32>
    %8 = vector.shape_cast %7 : vector<1x1x64xf32> to vector<1x64xf32>
    %9 = arith.mulf %3, %3 : vector<16x64xf32>
    %cst = arith.constant dense<0.000000e+00> : vector<16xf32>
    %10 = vector.multi_reduction <add>, %9, %cst [1] : vector<16x64xf32> to vector<16xf32>
    %11 = vector.shape_cast %10 : vector<16xf32> to vector<16x1xf32>
    %cst_11 = arith.constant 6.400000e+01 : f32
    %12 = vector.broadcast %cst_11 : f32 to vector<16x1xf32>
    %13 = arith.divf %11, %12 : vector<16x1xf32>
    %cst_12 = arith.constant 9.99999997E-7 : f32
    %14 = vector.broadcast %cst_12 : f32 to vector<16x1xf32>
    %15 = arith.addf %13, %14 : vector<16x1xf32>
    %16 = math.rsqrt %15 : vector<16x1xf32>
    %17 = vector.broadcast %16 : vector<16x1xf32> to vector<16x64xf32>
    %18 = arith.mulf %3, %17 : vector<16x64xf32>
    %cst_13 = arith.constant 1.000000e+00 : f32
    %19 = vector.broadcast %cst_13 : f32 to vector<1x64xf32>
    %20 = arith.addf %19, %8 : vector<1x64xf32>
    %21 = vector.broadcast %20 : vector<1x64xf32> to vector<16x64xf32>
    %22 = arith.mulf %18, %21 : vector<16x64xf32>
    %23 = arith.truncf %22 : vector<16x64xf32> to vector<16x64xbf16>
    %c0_14 = arith.constant 0 : index
    %c0_15 = arith.constant 0 : index
    %c0_16 = arith.constant 0 : index
    %24 = vector.load %arg6[%c0_14, %c0_15, %c0_16] : memref<1x64x192xbf16, #tpu.memory_space<vmem>>, vector<1x64x192xbf16>
    %25 = vector.shape_cast %24 : vector<1x64x192xbf16> to vector<64x192xbf16>
    %cst_17 = arith.constant dense<0.000000e+00> : vector<16x192xf32>
    %26 = tpu.matmul %23, %25, %cst_17 {dimension_numbers = #tpu.dot_dimension_numbers<[1], [0], [0], [1], [0, 0, 1, 1], [], []>} : vector<16x64xbf16>, vector<64x192xbf16>, vector<16x192xf32> -> vector<16x192xf32>
    %27 = vector.extract_strided_slice %26 {offsets = [0, 0], sizes = [16, 64], strides = [1, 1]} : vector<16x192xf32> to vector<16x64xf32>
    %28 = vector.extract_strided_slice %27 {offsets = [0, 16], sizes = [16, 16], strides = [1, 1]} : vector<16x64xf32> to vector<16x16xf32>
    %cst_18 = arith.constant 0.000000e+00 : f32
    %29 = vector.broadcast %cst_18 : f32 to vector<16x16xf32>
    %30 = arith.subf %29, %28 : vector<16x16xf32>
    %31 = vector.extract_strided_slice %27 {offsets = [0, 0], sizes = [16, 16], strides = [1, 1]} : vector<16x64xf32> to vector<16x16xf32>
    %32 = vector.extract_strided_slice %27 {offsets = [0, 48], sizes = [16, 16], strides = [1, 1]} : vector<16x64xf32> to vector<16x16xf32>
    %cst_19 = arith.constant 0.000000e+00 : f32
    %33 = vector.broadcast %cst_19 : f32 to vector<16x16xf32>
    %34 = arith.subf %33, %32 : vector<16x16xf32>
    %35 = vector.extract_strided_slice %27 {offsets = [0, 32], sizes = [16, 16], strides = [1, 1]} : vector<16x64xf32> to vector<16x16xf32>
    %36 = arith.mulf %27, %5 : vector<16x64xf32>
    %37 = tpu.concatenate %30, %31, %34, %35 in 1 : vector<16x16xf32>, vector<16x16xf32>, vector<16x16xf32>, vector<16x16xf32> -> vector<16x64xf32>
    %38 = arith.mulf %37, %6 : vector<16x64xf32>
    %39 = arith.addf %36, %38 : vector<16x64xf32>
    %40 = vector.extract_strided_slice %26 {offsets = [0, 64], sizes = [16, 64], strides = [1, 1]} : vector<16x192xf32> to vector<16x64xf32>
    %41 = vector.extract_strided_slice %40 {offsets = [0, 16], sizes = [16, 16], strides = [1, 1]} : vector<16x64xf32> to vector<16x16xf32>
    %cst_20 = arith.constant 0.000000e+00 : f32
    %42 = vector.broadcast %cst_20 : f32 to vector<16x16xf32>
    %43 = arith.subf %42, %41 : vector<16x16xf32>
    %44 = vector.extract_strided_slice %40 {offsets = [0, 0], sizes = [16, 16], strides = [1, 1]} : vector<16x64xf32> to vector<16x16xf32>
    %45 = vector.extract_strided_slice %40 {offsets = [0, 48], sizes = [16, 16], strides = [1, 1]} : vector<16x64xf32> to vector<16x16xf32>
    %cst_21 = arith.constant 0.000000e+00 : f32
    %46 = vector.broadcast %cst_21 : f32 to vector<16x16xf32>
    %47 = arith.subf %46, %45 : vector<16x16xf32>
    %48 = vector.extract_strided_slice %40 {offsets = [0, 32], sizes = [16, 16], strides = [1, 1]} : vector<16x64xf32> to vector<16x16xf32>
    %49 = arith.mulf %40, %5 : vector<16x64xf32>
    %50 = tpu.concatenate %43, %44, %47, %48 in 1 : vector<16x16xf32>, vector<16x16xf32>, vector<16x16xf32>, vector<16x16xf32> -> vector<16x64xf32>
    %51 = arith.mulf %50, %6 : vector<16x64xf32>
    %52 = arith.addf %49, %51 : vector<16x64xf32>
    %53 = vector.extract_strided_slice %26 {offsets = [0, 128], sizes = [16, 64], strides = [1, 1]} : vector<16x192xf32> to vector<16x64xf32>
    %54 = vector.extract_strided_slice %39 {offsets = [0, 0], sizes = [16, 32], strides = [1, 1]} : vector<16x64xf32> to vector<16x32xf32>
    %55 = vector.extract_strided_slice %39 {offsets = [0, 32], sizes = [16, 32], strides = [1, 1]} : vector<16x64xf32> to vector<16x32xf32>
    %56 = tpu.concatenate %54, %55 in 0 : vector<16x32xf32>, vector<16x32xf32> -> vector<32x32xf32>
    %57 = arith.truncf %56 : vector<32x32xf32> to vector<32x32xbf16>
    %58 = vector.extract_strided_slice %52 {offsets = [0, 0], sizes = [16, 32], strides = [1, 1]} : vector<16x64xf32> to vector<16x32xf32>
    %59 = vector.extract_strided_slice %52 {offsets = [0, 32], sizes = [16, 32], strides = [1, 1]} : vector<16x64xf32> to vector<16x32xf32>
    %60 = tpu.concatenate %58, %59 in 0 : vector<16x32xf32>, vector<16x32xf32> -> vector<32x32xf32>
    %61 = arith.truncf %60 : vector<32x32xf32> to vector<32x32xbf16>
    %62 = vector.extract_strided_slice %53 {offsets = [0, 0], sizes = [16, 32], strides = [1, 1]} : vector<16x64xf32> to vector<16x32xf32>
    %63 = vector.extract_strided_slice %53 {offsets = [0, 32], sizes = [16, 32], strides = [1, 1]} : vector<16x64xf32> to vector<16x32xf32>
    %64 = tpu.concatenate %62, %63 in 0 : vector<16x32xf32>, vector<16x32xf32> -> vector<32x32xf32>
    %65 = arith.truncf %64 : vector<32x32xf32> to vector<32x32xbf16>
    %66 = tpu.transpose %61, [1, 0] : vector<32x32xbf16> -> vector<32x32xbf16>
    %cst_22 = arith.constant dense<0.000000e+00> : vector<32x32xf32>
    %67 = tpu.matmul %57, %66, %cst_22 {dimension_numbers = #tpu.dot_dimension_numbers<[1], [0], [0], [1], [0, 0, 1, 1], [], []>} : vector<32x32xbf16>, vector<32x32xbf16>, vector<32x32xf32> -> vector<32x32xf32>
    %68 = arith.addf %67, %4 : vector<32x32xf32>
    %cst_23 = arith.constant dense<0xFF800000> : vector<32xf32>
    %69 = vector.multi_reduction <maximumf>, %68, %cst_23 [1] : vector<32x32xf32> to vector<32xf32>
    %70 = vector.shape_cast %69 : vector<32xf32> to vector<32x1xf32>
    %71 = vector.broadcast %70 : vector<32x1xf32> to vector<32x32xf32>
    %72 = arith.subf %68, %71 : vector<32x32xf32>
    %73 = math.exp %72 : vector<32x32xf32>
    %cst_24 = arith.constant dense<0.000000e+00> : vector<32xf32>
    %74 = vector.multi_reduction <add>, %73, %cst_24 [1] : vector<32x32xf32> to vector<32xf32>
    %75 = vector.shape_cast %74 : vector<32xf32> to vector<32x1xf32>
    %76 = tpu.reciprocal %75 {approx = true} : vector<32x1xf32> -> vector<32x1xf32>
    %77 = vector.broadcast %76 : vector<32x1xf32> to vector<32x32xf32>
    %78 = arith.mulf %73, %77 : vector<32x32xf32>
    %79 = arith.truncf %78 : vector<32x32xf32> to vector<32x32xbf16>
    %cst_25 = arith.constant dense<0.000000e+00> : vector<32x32xf32>
    %80 = tpu.matmul %79, %65, %cst_25 {dimension_numbers = #tpu.dot_dimension_numbers<[1], [0], [0], [1], [0, 0, 1, 1], [], []>} : vector<32x32xbf16>, vector<32x32xbf16>, vector<32x32xf32> -> vector<32x32xf32>
    %81 = vector.extract_strided_slice %80 {offsets = [0, 0], sizes = [16, 32], strides = [1, 1]} : vector<32x32xf32> to vector<16x32xf32>
    %82 = vector.extract_strided_slice %80 {offsets = [16, 0], sizes = [16, 32], strides = [1, 1]} : vector<32x32xf32> to vector<16x32xf32>
    %83 = tpu.concatenate %81, %82 in 1 : vector<16x32xf32>, vector<16x32xf32> -> vector<16x64xf32>
    %84 = arith.truncf %83 : vector<16x64xf32> to vector<16x64xbf16>
    %c0_26 = arith.constant 0 : index
    %c0_27 = arith.constant 0 : index
    %c0_28 = arith.constant 0 : index
    %85 = vector.load %arg7[%c0_26, %c0_27, %c0_28] : memref<1x64x64xbf16, #tpu.memory_space<vmem>>, vector<1x64x64xbf16>
    %86 = vector.shape_cast %85 : vector<1x64x64xbf16> to vector<64x64xbf16>
    %cst_29 = arith.constant dense<0.000000e+00> : vector<16x64xf32>
    %87 = tpu.matmul %84, %86, %cst_29 {dimension_numbers = #tpu.dot_dimension_numbers<[1], [0], [0], [1], [0, 0, 1, 1], [], []>} : vector<16x64xbf16>, vector<64x64xbf16>, vector<16x64xf32> -> vector<16x64xf32>
    %88 = arith.addf %3, %87 : vector<16x64xf32>
    %c0_30 = arith.constant 0 : index
    %c0_31 = arith.constant 0 : index
    %c0_32 = arith.constant 0 : index
    %89 = vector.load %arg8[%c0_30, %c0_31, %c0_32] : memref<1x1x64xf32, #tpu.memory_space<vmem>>, vector<1x1x64xf32>
    %90 = vector.shape_cast %89 : vector<1x1x64xf32> to vector<1x64xf32>
    %91 = arith.mulf %88, %88 : vector<16x64xf32>
    %cst_33 = arith.constant dense<0.000000e+00> : vector<16xf32>
    %92 = vector.multi_reduction <add>, %91, %cst_33 [1] : vector<16x64xf32> to vector<16xf32>
    %93 = vector.shape_cast %92 : vector<16xf32> to vector<16x1xf32>
    %cst_34 = arith.constant 6.400000e+01 : f32
    %94 = vector.broadcast %cst_34 : f32 to vector<16x1xf32>
    %95 = arith.divf %93, %94 : vector<16x1xf32>
    %cst_35 = arith.constant 9.99999997E-7 : f32
    %96 = vector.broadcast %cst_35 : f32 to vector<16x1xf32>
    %97 = arith.addf %95, %96 : vector<16x1xf32>
    %98 = math.rsqrt %97 : vector<16x1xf32>
    %99 = vector.broadcast %98 : vector<16x1xf32> to vector<16x64xf32>
    %100 = arith.mulf %88, %99 : vector<16x64xf32>
    %cst_36 = arith.constant 1.000000e+00 : f32
    %101 = vector.broadcast %cst_36 : f32 to vector<1x64xf32>
    %102 = arith.addf %101, %90 : vector<1x64xf32>
    %103 = vector.broadcast %102 : vector<1x64xf32> to vector<16x64xf32>
    %104 = arith.mulf %100, %103 : vector<16x64xf32>
    %105 = arith.truncf %104 : vector<16x64xf32> to vector<16x64xbf16>
    %c0_37 = arith.constant 0 : index
    %c0_38 = arith.constant 0 : index
    %c0_39 = arith.constant 0 : index
    %106 = vector.load %arg9[%c0_37, %c0_38, %c0_39] : memref<1x64x256xbf16, #tpu.memory_space<vmem>>, vector<1x64x256xbf16>
    %107 = vector.shape_cast %106 : vector<1x64x256xbf16> to vector<64x256xbf16>
    %cst_40 = arith.constant dense<0.000000e+00> : vector<16x256xf32>
    %108 = tpu.matmul %105, %107, %cst_40 {dimension_numbers = #tpu.dot_dimension_numbers<[1], [0], [0], [1], [0, 0, 1, 1], [], []>} : vector<16x64xbf16>, vector<64x256xbf16>, vector<16x256xf32> -> vector<16x256xf32>
    %109 = vector.extract_strided_slice %108 {offsets = [0, 0], sizes = [16, 128], strides = [1, 1]} : vector<16x256xf32> to vector<16x128xf32>
    %110 = arith.mulf %109, %109 : vector<16x128xf32>
    %111 = arith.mulf %109, %110 : vector<16x128xf32>
    %cst_41 = arith.constant 4.471500e-02 : f32
    %112 = vector.broadcast %cst_41 : f32 to vector<16x128xf32>
    %113 = arith.mulf %112, %111 : vector<16x128xf32>
    %114 = arith.addf %109, %113 : vector<16x128xf32>
    %cst_42 = arith.constant 0.797884583 : f32
    %115 = vector.broadcast %cst_42 : f32 to vector<16x128xf32>
    %116 = arith.mulf %115, %114 : vector<16x128xf32>
    %117 = math.tanh %116 : vector<16x128xf32>
    %cst_43 = arith.constant 1.000000e+00 : f32
    %118 = vector.broadcast %cst_43 : f32 to vector<16x128xf32>
    %119 = arith.addf %118, %117 : vector<16x128xf32>
    %cst_44 = arith.constant 5.000000e-01 : f32
    %120 = vector.broadcast %cst_44 : f32 to vector<16x128xf32>
    %121 = arith.mulf %120, %119 : vector<16x128xf32>
    %122 = arith.mulf %109, %121 : vector<16x128xf32>
    %123 = vector.extract_strided_slice %108 {offsets = [0, 128], sizes = [16, 128], strides = [1, 1]} : vector<16x256xf32> to vector<16x128xf32>
    %124 = arith.mulf %122, %123 : vector<16x128xf32>
    %125 = arith.truncf %124 : vector<16x128xf32> to vector<16x128xbf16>
    %c0_45 = arith.constant 0 : index
    %c0_46 = arith.constant 0 : index
    %c0_47 = arith.constant 0 : index
    %126 = vector.load %arg10[%c0_45, %c0_46, %c0_47] : memref<1x128x64xbf16, #tpu.memory_space<vmem>>, vector<1x128x64xbf16>
    %127 = vector.shape_cast %126 : vector<1x128x64xbf16> to vector<128x64xbf16>
    %cst_48 = arith.constant dense<0.000000e+00> : vector<16x64xf32>
    %128 = tpu.matmul %125, %127, %cst_48 {dimension_numbers = #tpu.dot_dimension_numbers<[1], [0], [0], [1], [0, 0, 1, 1], [], []>} : vector<16x128xbf16>, vector<128x64xbf16>, vector<16x64xf32> -> vector<16x64xf32>
    %129 = arith.addf %88, %128 : vector<16x64xf32>
    %c0_49 = arith.constant 0 : index
    %c0_50 = arith.constant 0 : index
    %130 = vector.load %arg13[%c0_49, %c0_50] : memref<16x64xf32, #tpu.memory_space<vmem>>, vector<16x64xf32>
    tpu.vector_store %arg13[%c0_49, %c0_50], %129 {strides = array<i32>} : memref<16x64xf32, #tpu.memory_space<vmem>>, vector<16x64xf32>,
    %c1_i32 = arith.constant 1 : i32
    %131 = arith.cmpi eq, %arg0, %c1_i32 : i32
    %132 = arith.extui %131 : i1 to i32
    %c0_i32_51 = arith.constant 0 : i32
    %133 = arith.cmpi ne, %132, %c0_i32_51 : i32
    scf.if %133 {
      %c0_52 = arith.constant 0 : index
      %c0_53 = arith.constant 0 : index
      %134 = vector.load %arg11[%c0_52, %c0_53] : memref<1x64xf32, #tpu.memory_space<vmem>>, vector<1x64xf32>
      %135 = arith.mulf %129, %129 : vector<16x64xf32>
      %cst_54 = arith.constant dense<0.000000e+00> : vector<16xf32>
      %136 = vector.multi_reduction <add>, %135, %cst_54 [1] : vector<16x64xf32> to vector<16xf32>
      %137 = vector.shape_cast %136 : vector<16xf32> to vector<16x1xf32>
      %cst_55 = arith.constant 6.400000e+01 : f32
      %138 = vector.broadcast %cst_55 : f32 to vector<16x1xf32>
      %139 = arith.divf %137, %138 : vector<16x1xf32>
      %cst_56 = arith.constant 9.99999997E-7 : f32
      %140 = vector.broadcast %cst_56 : f32 to vector<16x1xf32>
      %141 = arith.addf %139, %140 : vector<16x1xf32>
      %142 = math.rsqrt %141 : vector<16x1xf32>
      %143 = vector.broadcast %142 : vector<16x1xf32> to vector<16x64xf32>
      %144 = arith.mulf %129, %143 : vector<16x64xf32>
      %cst_57 = arith.constant 1.000000e+00 : f32
      %145 = vector.broadcast %cst_57 : f32 to vector<1x64xf32>
      %146 = arith.addf %145, %134 : vector<1x64xf32>
      %147 = vector.broadcast %146 : vector<1x64xf32> to vector<16x64xf32>
      %148 = arith.mulf %144, %147 : vector<16x64xf32>
      %c0_58 = arith.constant 0 : index
      %c0_59 = arith.constant 0 : index
      %149 = vector.load %arg12[%c0_58, %c0_59] : memref<16x64xf32, #tpu.memory_space<vmem>>, vector<16x64xf32>
      tpu.vector_store %arg12[%c0_58, %c0_59], %148 {strides = array<i32>} : memref<16x64xf32, #tpu.memory_space<vmem>>, vector<16x64xf32>,
    } else {
    }
    return
  }
  func.func @transform_0(%arg0: i32) -> (i32, i32) {
    %c0_i32 = arith.constant 0 : i32
    %c0_i32_0 = arith.constant 0 : i32
    %c0_i32_1 = arith.constant 0 : i32
    return %c0_i32, %c0_i32_0 : i32, i32
  }
  func.func @transform_1(%arg0: i32) -> (i32, i32) {
    %c0_i32 = arith.constant 0 : i32
    %c0_i32_0 = arith.constant 0 : i32
    %c0_i32_1 = arith.constant 0 : i32
    return %c0_i32, %c0_i32_0 : i32, i32
  }
  func.func @transform_2(%arg0: i32) -> (i32, i32) {
    %c0_i32 = arith.constant 0 : i32
    %c0_i32_0 = arith.constant 0 : i32
    %c0_i32_1 = arith.constant 0 : i32
    return %c0_i32, %c0_i32_0 : i32, i32
  }
  func.func @transform_3(%arg0: i32) -> (i32, i32) {
    %c0_i32 = arith.constant 0 : i32
    %c0_i32_0 = arith.constant 0 : i32
    %c0_i32_1 = arith.constant 0 : i32
    return %c0_i32, %c0_i32_0 : i32, i32
  }
  func.func @transform_4(%arg0: i32) -> (i32, i32, i32) {
    %c0_i32 = arith.constant 0 : i32
    %c0_i32_0 = arith.constant 0 : i32
    %c0_i32_1 = arith.constant 0 : i32
    return %arg0, %c0_i32, %c0_i32_0 : i32, i32, i32
  }
  func.func @transform_5(%arg0: i32) -> (i32, i32, i32) {
    %c0_i32 = arith.constant 0 : i32
    %c0_i32_0 = arith.constant 0 : i32
    %c0_i32_1 = arith.constant 0 : i32
    return %arg0, %c0_i32, %c0_i32_0 : i32, i32, i32
  }
  func.func @transform_6(%arg0: i32) -> (i32, i32, i32) {
    %c0_i32 = arith.constant 0 : i32
    %c0_i32_0 = arith.constant 0 : i32
    %c0_i32_1 = arith.constant 0 : i32
    return %arg0, %c0_i32, %c0_i32_0 : i32, i32, i32
  }
  func.func @transform_7(%arg0: i32) -> (i32, i32, i32) {
    %c0_i32 = arith.constant 0 : i32
    %c0_i32_0 = arith.constant 0 : i32
    %c0_i32_1 = arith.constant 0 : i32
    return %arg0, %c0_i32, %c0_i32_0 : i32, i32, i32
  }
  func.func @transform_8(%arg0: i32) -> (i32, i32, i32) {
    %c0_i32 = arith.constant 0 : i32
    %c0_i32_0 = arith.constant 0 : i32
    %c0_i32_1 = arith.constant 0 : i32
    return %arg0, %c0_i32, %c0_i32_0 : i32, i32, i32
  }
  func.func @transform_9(%arg0: i32) -> (i32, i32, i32) {
    %c0_i32 = arith.constant 0 : i32
    %c0_i32_0 = arith.constant 0 : i32
    %c0_i32_1 = arith.constant 0 : i32
    return %arg0, %c0_i32, %c0_i32_0 : i32, i32, i32
  }
  func.func @transform_10(%arg0: i32) -> (i32, i32) {
    %c0_i32 = arith.constant 0 : i32
    %c0_i32_0 = arith.constant 0 : i32
    %c0_i32_1 = arith.constant 0 : i32
    return %c0_i32, %c0_i32_0 : i32, i32
  }
  func.func @transform_11(%arg0: i32) -> (i32, i32) {
    %c0_i32 = arith.constant 0 : i32
    %c0_i32_0 = arith.constant 0 : i32
    %c0_i32_1 = arith.constant 0 : i32
    return %c0_i32, %c0_i32_0 : i32, i32
  }
}

</mosaic_0001>

<llo_original>
// kernel: tpu_custom_call.1
$region0: #{tpu_custom_call.1}
  #allocation0 [shape = 'u32[]', space=smem, size = 0x4, offset = 0x4, fixed_abs, tag = 'smem constant byte address 0x4 - core index']
  #allocation1 [shape = 'u32[144,128]{1,0:T(1,128)}', space=vmem, size = 0x12000, scoped, tag = 'internal scratch']
  #allocation2 [shape = 'f32[16,64]{1,0:T(8,128)}', space=vmem, size = 0x2000, scoped, tag = 'scratch operand']
  %s0 = inlined_call_operand.vmem [shape: f32[16,64], index: 0, kind: input, shape index: {}]
  %s1 = inlined_call_operand.hbm [shape: f32[32,32], index: 1, kind: input, shape index: {}]
  %s2 = inlined_call_operand.hbm [shape: f32[16,64], index: 2, kind: input, shape index: {}]
  %s3 = inlined_call_operand.hbm [shape: f32[16,64], index: 3, kind: input, shape index: {}]
  %s4 = inlined_call_operand.vmem [shape: f32[2,1,64], index: 4, kind: input, shape index: {}]
  %s5 = inlined_call_operand.vmem [shape: bf16[2,64,192], index: 5, kind: input, shape index: {}]
  %s6 = inlined_call_operand.vmem [shape: bf16[2,64,64], index: 6, kind: input, shape index: {}]
  %s7 = inlined_call_operand.vmem [shape: f32[2,1,64], index: 7, kind: input, shape index: {}]
  %s8 = inlined_call_operand.hbm [shape: bf16[2,64,256], index: 8, kind: input, shape index: {}]
  %s9 = inlined_call_operand.vmem [shape: bf16[2,128,64], index: 9, kind: input, shape index: {}]
  %s10 = inlined_call_operand.vmem [shape: f32[1,64], index: 10, kind: input, shape index: {}]
  %s11 = inlined_call_operand.hbm [shape: f32[16,64], index: 11, kind: output, shape index: {}]
  %s12 = sld [smem:[#allocation0]]
  $region101: #{tpu_custom_call.1} parent=0
    _
  %s14 = ssub.s32 1, %s12
  %s15 = scalar_select 0, %s14, %s12
  $region1: #{tpu_custom_call.1} parent=0
    #allocation3 [shape = 'u8[16384]{0}', space=vmem, size = 0x4000, scoped, tag = 'input window, operand 1, single buffered']
    #allocation4 [shape = 's32[2]{0}', space=sflag, size = 0x8, scoped, tag = 'scoped memory for tpu_custom_call.1']
    #allocation5 [shape = 's32[2]{0}', space=sflag, size = 0x8, scoped, tag = 'scoped memory for tpu_custom_call.1']
    #allocation6 [shape = 'u8[8192]{0}', space=vmem, size = 0x2000, scoped, tag = 'input window, operand 2, single buffered']
    #allocation7 [shape = 's32[1]{0}', space=sflag, size = 0x4, scoped, tag = 'scoped memory for tpu_custom_call.1']
    #allocation8 [shape = 'u8[8192]{0}', space=vmem, size = 0x2000, scoped, tag = 'input window, operand 3, single buffered']
    #allocation9 [shape = 'u8[65536]{0}', space=vmem, size = 0x10000, scoped, tag = 'input window, operand 8']
    #allocation10 [shape = 's32[2]{0}', space=sflag, size = 0x8, scoped, tag = 'scoped memory for tpu_custom_call.1']
    #allocation11 [shape = 'u8[8192]{0}', space=vmem, size = 0x2000, scoped, tag = 'output window, operand 0, single buffered']
    %16 = vsyncpa [#allocation4], 0
    %17 = vsyncpa [#allocation7], 0
    %18 = vsyncpa [#allocation10], 0
    %s19 = scalar_lea.sflag [#allocation10], 1
    %20 = vsyncpa %s19, 0
    %21 = vsyncpa [#allocation5], 0
    loop: start=0, step=1, limit=4
    $region2: #{tpu_custom_call.1} parent=1 // loop_pre_header
      _
    $region3: #{tpu_custom_call.1} parent=1 // loop_header
      %s23 = sphi 0, %s27
      %p24 = scmp.ge.s32.totalorder %s23, 4
      %s31 = sphi 0, %s31
      %s33 = sphi 0, %s31
      %s34 = sphi 0, %s33
      %s48 = sphi 0, %s34
      %s52 = sphi 0, %s52
      %s54 = sphi 0, %s52
      %s55 = sphi 0, %s54
      %s69 = sphi 0, %s55
      %s73 = sphi 0, %s73
      %s75 = sphi 0, %s73
      %s76 = sphi 0, %s75
      %s90 = sphi 0, %s76
      %s94 = sphi 0, %s94
      %s96 = sphi 0, %s94
      %s97 = sphi 0, %s96
      %s111 = sphi 0, %s97
      %s117 = sphi 0, %s119
      %s120 = sphi 0, %s117
      %s121 = sphi 0, %s120
      %s137 = sphi 0, %s121
      %s143 = sphi 0, %s145
      %s146 = sphi 0, %s143
      %s147 = sphi 0, %s146
      %s163 = sphi 0, %s147
      %s169 = sphi 0, %s171
      %s172 = sphi 0, %s169
      %s173 = sphi 0, %s172
      %s189 = sphi 0, %s173
      %s195 = sphi 0, %s197
      %s198 = sphi 0, %s195
      %s199 = sphi 0, %s198
      %s215 = sphi 0, %s199
      %s221 = sphi 0, %s223
      %s224 = sphi 0, %s221
      %s225 = sphi 0, %s224
      %s241 = sphi 0, %s225
      %s247 = sphi 0, %s249
      %s250 = sphi 0, %s247
      %s251 = sphi 0, %s250
      %s267 = sphi 0, %s251
      %s271 = sphi 0, %s271
      %s273 = sphi 0, %s271
      %s274 = sphi 0, %s273
      %s288 = sphi 0, %s274
      %s292 = sphi 0, %s292
      %s294 = sphi 0, %s292
      %s295 = sphi 0, %s294
      %s309 = sphi 0, %s295
    $region4: #{tpu_custom_call.1} parent=1 // loop_header_branch
      %26 = sbr.rel (%p24) target = $region8
    $region5: #{tpu_custom_call.1} parent=1 // loop_body
      %s28 = ssub.s32 %s23, 1
      %s29 = ssub.s32 %s23, 2
      %s30 = sadd.s32 %s23, 1
      %s32 = sadd.s32 %s31, 1
      %p35 = scmp.eq.s32.totalorder %s23, 1
      %p36 = scmp.ne.s32.totalorder %s31, %s33
      %p37 = scmp.eq.s32.totalorder %s23, 0
      %p38 = por %p36, %p37
      %p39 = scmp.ne.s32.totalorder %s31, %s33
      %p40 = scmp.eq.s32.totalorder %s28, 1
      %p41 = por %p39, %p40
      %p42 = scmp.ne.s32.totalorder %s33, %s34
      %p43 = scmp.eq.s32.totalorder %s28, 0
      %p44 = por %p42, %p43
      %p45 = scmp.ne.s32.totalorder %s33, %s34
      %p46 = scmp.eq.s32.totalorder %s29, 1
      %p47 = por %p45, %p46
      %p49 = scmp.ne.s32.totalorder %s34, %s48
      %p50 = scmp.eq.s32.totalorder %s29, 0
      %p51 = por %p49, %p50
      %s53 = sadd.s32 %s52, 1
      %p56 = scmp.eq.s32.totalorder %s23, 1
      %p57 = scmp.ne.s32.totalorder %s52, %s54
      %p58 = scmp.eq.s32.totalorder %s23, 0
      %p59 = por %p57, %p58
      %p60 = scmp.ne.s32.totalorder %s52, %s54
      %p61 = scmp.eq.s32.totalorder %s28, 1
      %p62 = por %p60, %p61
      %p63 = scmp.ne.s32.totalorder %s54, %s55
      %p64 = scmp.eq.s32.totalorder %s28, 0
      %p65 = por %p63, %p64
      %p66 = scmp.ne.s32.totalorder %s54, %s55
      %p67 = scmp.eq.s32.totalorder %s29, 1
      %p68 = por %p66, %p67
      %p70 = scmp.ne.s32.totalorder %s55, %s69
      %p71 = scmp.eq.s32.totalorder %s29, 0
      %p72 = por %p70, %p71
      %s74 = sadd.s32 %s73, 1
      %p77 = scmp.eq.s32.totalorder %s23, 1
      %p78 = scmp.ne.s32.totalorder %s73, %s75
      %p79 = scmp.eq.s32.totalorder %s23, 0
      %p80 = por %p78, %p79
      %p81 = scmp.ne.s32.totalorder %s73, %s75
      %p82 = scmp.eq.s32.totalorder %s28, 1
      %p83 = por %p81, %p82
      %p84 = scmp.ne.s32.totalorder %s75, %s76
      %p85 = scmp.eq.s32.totalorder %s28, 0
      %p86 = por %p84, %p85
      %p87 = scmp.ne.s32.totalorder %s75, %s76
      %p88 = scmp.eq.s32.totalorder %s29, 1
      %p89 = por %p87, %p88
      %p91 = scmp.ne.s32.totalorder %s76, %s90
      %p92 = scmp.eq.s32.totalorder %s29, 0
      %p93 = por %p91, %p92
      %s95 = sadd.s32 %s94, 1
      %p98 = scmp.eq.s32.totalorder %s23, 1
      %p99 = scmp.ne.s32.totalorder %s94, %s96
      %p100 = scmp.eq.s32.totalorder %s23, 0
      %p101 = por %p99, %p100
      %p102 = scmp.ne.s32.totalorder %s94, %s96
      %p103 = scmp.eq.s32.totalorder %s28, 1
      %p104 = por %p102, %p103
      %p105 = scmp.ne.s32.totalorder %s96, %s97
      %p106 = scmp.eq.s32.totalorder %s28, 0
      %p107 = por %p105, %p106
      %p108 = scmp.ne.s32.totalorder %s96, %s97
      %p109 = scmp.eq.s32.totalorder %s29, 1
      %p110 = por %p108, %p109
      %p112 = scmp.ne.s32.totalorder %s97, %s111
      %p113 = scmp.eq.s32.totalorder %s29, 0
      %p114 = por %p112, %p113
      %s115 = ssub.s32 %s23, %s30
      %p116 = scmp.eq.s32.totalorder %s115, 0
      %s118 = sadd.s32 %s117, 1
      %s119 = scalar_select %p116, %s117, %s118
      %p122 = pneg %p116
      %p123 = scmp.eq.s32.totalorder %s23, 1
      %p124 = por %p122, %p123
      %p125 = scmp.ne.s32.totalorder %s117, %s120
      %p126 = scmp.eq.s32.totalorder %s23, 0
      %p127 = por %p125, %p126
      %p128 = scmp.ne.s32.totalorder %s117, %s120
      %p129 = scmp.eq.s32.totalorder %s28, 1
      %p130 = por %p128, %p129
      %p131 = scmp.ne.s32.totalorder %s120, %s121
      %p132 = scmp.eq.s32.totalorder %s28, 0
      %p133 = por %p131, %p132
      %p134 = scmp.ne.s32.totalorder %s120, %s121
      %p135 = scmp.eq.s32.totalorder %s29, 1
      %p136 = por %p134, %p135
      %p138 = scmp.ne.s32.totalorder %s121, %s137
      %p139 = scmp.eq.s32.totalorder %s29, 0
      %p140 = por %p138, %p139
      %s141 = ssub.s32 %s23, %s30
      %p142 = scmp.eq.s32.totalorder %s141, 0
      %s144 = sadd.s32 %s143, 1
      %s145 = scalar_select %p142, %s143, %s144
      %p148 = pneg %p142
      %p149 = scmp.eq.s32.totalorder %s23, 1
      %p150 = por %p148, %p149
      %p151 = scmp.ne.s32.totalorder %s143, %s146
      %p152 = scmp.eq.s32.totalorder %s23, 0
      %p153 = por %p151, %p152
      %p154 = scmp.ne.s32.totalorder %s143, %s146
      %p155 = scmp.eq.s32.totalorder %s28, 1
      %p156 = por %p154, %p155
      %p157 = scmp.ne.s32.totalorder %s146, %s147
      %p158 = scmp.eq.s32.totalorder %s28, 0
      %p159 = por %p157, %p158
      %p160 = scmp.ne.s32.totalorder %s146, %s147
      %p161 = scmp.eq.s32.totalorder %s29, 1
      %p162 = por %p160, %p161
      %p164 = scmp.ne.s32.totalorder %s147, %s163
      %p165 = scmp.eq.s32.totalorder %s29, 0
      %p166 = por %p164, %p165
      %s167 = ssub.s32 %s23, %s30
      %p168 = scmp.eq.s32.totalorder %s167, 0
      %s170 = sadd.s32 %s169, 1
      %s171 = scalar_select %p168, %s169, %s170
      %p174 = pneg %p168
      %p175 = scmp.eq.s32.totalorder %s23, 1
      %p176 = por %p174, %p175
      %p177 = scmp.ne.s32.totalorder %s169, %s172
      %p178 = scmp.eq.s32.totalorder %s23, 0
      %p179 = por %p177, %p178
      %p180 = scmp.ne.s32.totalorder %s169, %s172
      %p181 = scmp.eq.s32.totalorder %s28, 1
      %p182 = por %p180, %p181
      %p183 = scmp.ne.s32.totalorder %s172, %s173
      %p184 = scmp.eq.s32.totalorder %s28, 0
      %p185 = por %p183, %p184
      %p186 = scmp.ne.s32.totalorder %s172, %s173
      %p187 = scmp.eq.s32.totalorder %s29, 1
      %p188 = por %p186, %p187
      %p190 = scmp.ne.s32.totalorder %s173, %s189
      %p191 = scmp.eq.s32.totalorder %s29, 0
      %p192 = por %p190, %p191
      %s193 = ssub.s32 %s23, %s30
      %p194 = scmp.eq.s32.totalorder %s193, 0
      %s196 = sadd.s32 %s195, 1
      %s197 = scalar_select %p194, %s195, %s196
      %p200 = pneg %p194
      %p201 = scmp.eq.s32.totalorder %s23, 1
      %p202 = por %p200, %p201
      %p203 = scmp.ne.s32.totalorder %s195, %s198
      %p204 = scmp.eq.s32.totalorder %s23, 0
      %p205 = por %p203, %p204
      %p206 = scmp.ne.s32.totalorder %s195, %s198
      %p207 = scmp.eq.s32.totalorder %s28, 1
      %p208 = por %p206, %p207
      %p209 = scmp.ne.s32.totalorder %s198, %s199
      %p210 = scmp.eq.s32.totalorder %s28, 0
      %p211 = por %p209, %p210
      %p212 = scmp.ne.s32.totalorder %s198, %s199
      %p213 = scmp.eq.s32.totalorder %s29, 1
      %p214 = por %p212, %p213
      %p216 = scmp.ne.s32.totalorder %s199, %s215
      %p217 = scmp.eq.s32.totalorder %s29, 0
      %p218 = por %p216, %p217
      %s219 = ssub.s32 %s23, %s30
      %p220 = scmp.eq.s32.totalorder %s219, 0
      %s222 = sadd.s32 %s221, 1
      %s223 = scalar_select %p220, %s221, %s222
      %p226 = pneg %p220
      %p227 = scmp.eq.s32.totalorder %s23, 1
      %p228 = por %p226, %p227
      %p229 = scmp.ne.s32.totalorder %s221, %s224
      %p230 = scmp.eq.s32.totalorder %s23, 0
      %p231 = por %p229, %p230
      %p232 = scmp.ne.s32.totalorder %s221, %s224
      %p233 = scmp.eq.s32.totalorder %s28, 1
      %p234 = por %p232, %p233
      %p235 = scmp.ne.s32.totalorder %s224, %s225
      %p236 = scmp.eq.s32.totalorder %s28, 0
      %p237 = por %p235, %p236
      %p238 = scmp.ne.s32.totalorder %s224, %s225
      %p239 = scmp.eq.s32.totalorder %s29, 1
      %p240 = por %p238, %p239
      %p242 = scmp.ne.s32.totalorder %s225, %s241
      %p243 = scmp.eq.s32.totalorder %s29, 0
      %p244 = por %p242, %p243
      %s245 = ssub.s32 %s23, %s30
      %p246 = scmp.eq.s32.totalorder %s245, 0
      %s248 = sadd.s32 %s247, 1
      %s249 = scalar_select %p246, %s247, %s248
      %p252 = pneg %p246
      %p253 = scmp.eq.s32.totalorder %s23, 1
      %p254 = por %p252, %p253
      %p255 = scmp.ne.s32.totalorder %s247, %s250
      %p256 = scmp.eq.s32.totalorder %s23, 0
      %p257 = por %p255, %p256
      %p258 = scmp.ne.s32.totalorder %s247, %s250
      %p259 = scmp.eq.s32.totalorder %s28, 1
      %p260 = por %p258, %p259
      %p261 = scmp.ne.s32.totalorder %s250, %s251
      %p262 = scmp.eq.s32.totalorder %s28, 0
      %p263 = por %p261, %p262
      %p264 = scmp.ne.s32.totalorder %s250, %s251
      %p265 = scmp.eq.s32.totalorder %s29, 1
      %p266 = por %p264, %p265
      %p268 = scmp.ne.s32.totalorder %s251, %s267
      %p269 = scmp.eq.s32.totalorder %s29, 0
      %p270 = por %p268, %p269
      %s272 = sadd.s32 %s271, 1
      %p275 = scmp.eq.s32.totalorder %s23, 1
      %p276 = scmp.ne.s32.totalorder %s271, %s273
      %p277 = scmp.eq.s32.totalorder %s23, 0
      %p278 = por %p276, %p277
      %p279 = scmp.ne.s32.totalorder %s271, %s273
      %p280 = scmp.eq.s32.totalorder %s28, 1
      %p281 = por %p279, %p280
      %p282 = scmp.ne.s32.totalorder %s273, %s274
      %p283 = scmp.eq.s32.totalorder %s28, 0
      %p284 = por %p282, %p283
      %p285 = scmp.ne.s32.totalorder %s273, %s274
      %p286 = scmp.eq.s32.totalorder %s29, 1
      %p287 = por %p285, %p286
      %p289 = scmp.ne.s32.totalorder %s274, %s288
      %p290 = scmp.eq.s32.totalorder %s29, 0
      %p291 = por %p289, %p290
      %s293 = sadd.s32 %s292, 1
      %p296 = scmp.eq.s32.totalorder %s23, 1
      %p297 = scmp.ne.s32.totalorder %s292, %s294
      %p298 = scmp.eq.s32.totalorder %s23, 0
      %p299 = por %p297, %p298
      %p300 = scmp.ne.s32.totalorder %s292, %s294
      %p301 = scmp.eq.s32.totalorder %s28, 1
      %p302 = por %p300, %p301
      %p303 = scmp.ne.s32.totalorder %s294, %s295
      %p304 = scmp.eq.s32.totalorder %s28, 0
      %p305 = por %p303, %p304
      %p306 = scmp.ne.s32.totalorder %s294, %s295
      %p307 = scmp.eq.s32.totalorder %s29, 1
      %p308 = por %p306, %p307
      %p310 = scmp.ne.s32.totalorder %s295, %s309
      %p311 = scmp.eq.s32.totalorder %s29, 0
      %p312 = por %p310, %p311
      %p313 = scmp.le.s32.totalorder 1, %s23
      %p314 = scmp.lt.s32.totalorder %s23, 3
      %p315 = pnand %p313, %p314
      %p316 = pneg %p315
      // Predicated region
      $region9: #{tpu_custom_call.1} parent=5 // pred_check
        _
      $region10: #{tpu_custom_call.1} parent=5 // pred_check_branch
        %318 = sbr.rel (%p315) target = $region12
      $region11: #{tpu_custom_call.1} parent=5 // pred_region
        %s319 = ssub.s32 %s23, 1
        // Predicated region
        $region13: #{tpu_custom_call.1} parent=11 // pred_check
          %p320 = pneg %p44
        $region14: #{tpu_custom_call.1} parent=11 // pred_check_branch
          %322 = sbr.rel (%p320) target = $region16
        $region15: #{tpu_custom_call.1} parent=11 // pred_region
          _
        $region16: #{tpu_custom_call.1} parent=11 // pred_fallthru
          _
        // Predicated region
        $region17: #{tpu_custom_call.1} parent=11 // pred_check
          %p323 = pneg %p65
        $region18: #{tpu_custom_call.1} parent=11 // pred_check_branch
          %325 = sbr.rel (%p323) target = $region20
        $region19: #{tpu_custom_call.1} parent=11 // pred_region
          %s327 = ssub.s32 512, 512
          %328 = vsyncadd [#allocation4], %s327
          %s329 = sshll.u32 [#allocation3], 4
          %s330 = int_to_ptr.vmem [resolvable:$true] %s329
          %335 = dma.hbm_to_vmem [thread:$0]  %s1, 512, %s330, [#allocation4], 128, 128, 8
        $region20: #{tpu_custom_call.1} parent=11 // pred_fallthru
          _
        // Predicated region
        $region21: #{tpu_custom_call.1} parent=11 // pred_check
          %p336 = pneg %p86
        $region22: #{tpu_custom_call.1} parent=11 // pred_check_branch
          %338 = sbr.rel (%p336) target = $region24
        $region23: #{tpu_custom_call.1} parent=11 // pred_region
          %s340 = ssub.s32 256, 256
          %341 = vsyncadd [#allocation7], %s340
          %s342 = sshll.u32 [#allocation6], 4
          %s343 = int_to_ptr.vmem [resolvable:$true] %s342
          %348 = dma.hbm_to_vmem [thread:$0]  %s2, 256, %s343, [#allocation7], 128, 128, 8
        $region24: #{tpu_custom_call.1} parent=11 // pred_fallthru
          _
        // Predicated region
        $region25: #{tpu_custom_call.1} parent=11 // pred_check
          %p349 = pneg %p107
        $region26: #{tpu_custom_call.1} parent=11 // pred_check_branch
          %351 = sbr.rel (%p349) target = $region28
        $region27: #{tpu_custom_call.1} parent=11 // pred_region
          %s353 = ssub.s32 256, 256
          %354 = vsyncadd [#allocation7], %s353
          %s355 = sshll.u32 [#allocation8], 4
          %s356 = int_to_ptr.vmem [resolvable:$true] %s355
          %361 = dma.hbm_to_vmem [thread:$0]  %s3, 256, %s356, [#allocation7], 128, 128, 8
        $region28: #{tpu_custom_call.1} parent=11 // pred_fallthru
          _
        // Predicated region
        $region29: #{tpu_custom_call.1} parent=11 // pred_check
          %p362 = pneg %p284
        $region30: #{tpu_custom_call.1} parent=11 // pred_check_branch
          %364 = sbr.rel (%p362) target = $region32
        $region31: #{tpu_custom_call.1} parent=11 // pred_region
          _
        $region32: #{tpu_custom_call.1} parent=11 // pred_fallthru
          _
      $region12: #{tpu_custom_call.1} parent=5 // pred_fallthru
        _
      %p365 = scmp.lt.s32.totalorder %s23, 2
      // Predicated region
      $region33: #{tpu_custom_call.1} parent=5 // pred_check
        %p366 = pneg %p365
      $region34: #{tpu_custom_call.1} parent=5 // pred_check_branch
        %368 = sbr.rel (%p366) target = $region36
      $region35: #{tpu_custom_call.1} parent=5 // pred_region
        // Predicated region
        $region37: #{tpu_custom_call.1} parent=35 // pred_check
          %p369 = pneg %p127
        $region38: #{tpu_custom_call.1} parent=35 // pred_check_branch
          %371 = sbr.rel (%p369) target = $region40
        $region39: #{tpu_custom_call.1} parent=35 // pred_region
          %p372 = scmp.lt.s32.totalorder %s23, 1
          %s373 = scalar_select %p372, %s23, 1
          %s374 = scalar_lea.vmem %s4, %s373
        $region40: #{tpu_custom_call.1} parent=35 // pred_fallthru
          _
        // Predicated region
        $region41: #{tpu_custom_call.1} parent=35 // pred_check
          %p375 = pneg %p153
        $region42: #{tpu_custom_call.1} parent=35 // pred_check_branch
          %377 = sbr.rel (%p375) target = $region44
        $region43: #{tpu_custom_call.1} parent=35 // pred_region
          %p378 = scmp.lt.s32.totalorder %s23, 1
          %s379 = scalar_select %p378, %s23, 1
          %s380 = smul.addr %s379, 16
          %s381 = smul.addr %s380, 4
          %s382 = scalar_lea.vmem %s5, %s381
        $region44: #{tpu_custom_call.1} parent=35 // pred_fallthru
          _
        // Predicated region
        $region45: #{tpu_custom_call.1} parent=35 // pred_check
          %p383 = pneg %p179
        $region46: #{tpu_custom_call.1} parent=35 // pred_check_branch
          %385 = sbr.rel (%p383) target = $region48
        $region47: #{tpu_custom_call.1} parent=35 // pred_region
          %p386 = scmp.lt.s32.totalorder %s23, 1
          %s387 = scalar_select %p386, %s23, 1
          %s388 = smul.addr %s387, 8
          %s389 = smul.addr %s388, 4
          %s390 = scalar_lea.vmem %s6, %s389
        $region48: #{tpu_custom_call.1} parent=35 // pred_fallthru
          _
        // Predicated region
        $region49: #{tpu_custom_call.1} parent=35 // pred_check
          %p391 = pneg %p205
        $region50: #{tpu_custom_call.1} parent=35 // pred_check_branch
          %393 = sbr.rel (%p391) target = $region52
        $region51: #{tpu_custom_call.1} parent=35 // pred_region
          %p394 = scmp.lt.s32.totalorder %s23, 1
          %s395 = scalar_select %p394, %s23, 1
          %s396 = scalar_lea.vmem %s7, %s395
        $region52: #{tpu_custom_call.1} parent=35 // pred_fallthru
          _
        // Predicated region
        $region53: #{tpu_custom_call.1} parent=35 // pred_check
          %p397 = pneg %p231
        $region54: #{tpu_custom_call.1} parent=35 // pred_check_branch
          %399 = sbr.rel (%p397) target = $region56
        $region55: #{tpu_custom_call.1} parent=35 // pred_region
          %s400 = sand.u32 %s221, 1
          %s401 = scalar_lea.sflag [#allocation10], %s400
          %s402 = sand.u32 %s221, 1
          %s403 = smul.addr %s402, 64
          %s404 = scalar_lea.vmem [#allocation9], %s403
          %s406 = ssub.s32 1024, 1024
          %407 = vsyncadd %s401, %s406
          %s408 = smul.addr %s23, 16
          %s409 = smul.addr %s408, 64
          %s410 = scalar_lea.hbm %s8, %s409
          %s411 = sshll.u32 %s404, 4
          %s412 = int_to_ptr.vmem [resolvable:$true] %s411
          %417 = dma.hbm_to_vmem [thread:$0]  %s410, 1024, %s412, %s401, 128, 128, 8
        $region56: #{tpu_custom_call.1} parent=35 // pred_fallthru
          _
        // Predicated region
        $region57: #{tpu_custom_call.1} parent=35 // pred_check
          %p418 = pneg %p257
        $region58: #{tpu_custom_call.1} parent=35 // pred_check_branch
          %420 = sbr.rel (%p418) target = $region60
        $region59: #{tpu_custom_call.1} parent=35 // pred_region
          %p421 = scmp.lt.s32.totalorder %s23, 1
          %s422 = scalar_select %p421, %s23, 1
          %s423 = smul.addr %s422, 16
          %s424 = smul.addr %s423, 4
          %s425 = scalar_lea.vmem %s9, %s424
        $region60: #{tpu_custom_call.1} parent=35 // pred_fallthru
          _
      $region36: #{tpu_custom_call.1} parent=5 // pred_fallthru
        _
      %p426 = scmp.le.s32.totalorder 1, %s23
      %p427 = scmp.lt.s32.totalorder %s23, 3
      %p428 = pnand %p426, %p427
      %p429 = pneg %p428
      // Predicated region
      $region61: #{tpu_custom_call.1} parent=5 // pred_check
        _
      $region62: #{tpu_custom_call.1} parent=5 // pred_check_branch
        %431 = sbr.rel (%p428) target = $region64
      $region63: #{tpu_custom_call.1} parent=5 // pred_region
        %s432 = ssub.s32 %s23, 1
        // Predicated region
        $region65: #{tpu_custom_call.1} parent=63 // pred_check
          %p433 = pneg %p65
        $region66: #{tpu_custom_call.1} parent=63 // pred_check_branch
          %435 = sbr.rel (%p433) target = $region68
        $region67: #{tpu_custom_call.1} parent=63 // pred_region
          %436 = dma.done [#allocation4], 512
        $region68: #{tpu_custom_call.1} parent=63 // pred_fallthru
          _
        // Predicated region
        $region69: #{tpu_custom_call.1} parent=63 // pred_check
          %p437 = pneg %p86
        $region70: #{tpu_custom_call.1} parent=63 // pred_check_branch
          %439 = sbr.rel (%p437) target = $region72
        $region71: #{tpu_custom_call.1} parent=63 // pred_region
          %440 = dma.done [#allocation7], 256
        $region72: #{tpu_custom_call.1} parent=63 // pred_fallthru
          _
        // Predicated region
        $region73: #{tpu_custom_call.1} parent=63 // pred_check
          %p441 = pneg %p107
        $region74: #{tpu_custom_call.1} parent=63 // pred_check_branch
          %443 = sbr.rel (%p441) target = $region76
        $region75: #{tpu_custom_call.1} parent=63 // pred_region
          %444 = dma.done [#allocation7], 256
        $region76: #{tpu_custom_call.1} parent=63 // pred_fallthru
          _
        %s445 = sand.u32 %s224, 1
        %s446 = scalar_lea.sflag [#allocation10], %s445
        %s447 = sand.u32 %s224, 1
        %s448 = smul.addr %s447, 64
        %s449 = scalar_lea.vmem [#allocation9], %s448
        // Predicated region
        $region77: #{tpu_custom_call.1} parent=63 // pred_check
          %p450 = pneg %p237
        $region78: #{tpu_custom_call.1} parent=63 // pred_check_branch
          %452 = sbr.rel (%p450) target = $region80
        $region79: #{tpu_custom_call.1} parent=63 // pred_region
          %453 = dma.done %s446, 1024
        $region80: #{tpu_custom_call.1} parent=63 // pred_fallthru
          _
        %p454 = pneg %p44
        %p455 = pneg %p41
        %p456 = pneg %p65
        %p457 = pneg %p62
        %p458 = pneg %p86
        %p459 = pneg %p83
        %p460 = pneg %p107
        %p461 = pneg %p104
        %p462 = scmp.lt.s32.totalorder %s28, 1
        %s463 = scalar_select %p462, %s28, 1
        %s464 = scalar_lea.vmem %s4, %s463
        %p465 = pneg %p133
        %p466 = pneg %p130
        %p467 = scmp.lt.s32.totalorder %s28, 1
        %s468 = scalar_select %p467, %s28, 1
        %s469 = smul.addr %s468, 16
        %s470 = smul.addr %s469, 4
        %s471 = scalar_lea.vmem %s5, %s470
        %p472 = pneg %p159
        %p473 = pneg %p156
        %p474 = scmp.lt.s32.totalorder %s28, 1
        %s475 = scalar_select %p474, %s28, 1
        %s476 = smul.addr %s475, 8
        %s477 = smul.addr %s476, 4
        %s478 = scalar_lea.vmem %s6, %s477
        %p479 = pneg %p185
        %p480 = pneg %p182
        %p481 = scmp.lt.s32.totalorder %s28, 1
        %s482 = scalar_select %p481, %s28, 1
        %s483 = scalar_lea.vmem %s7, %s482
        %p484 = pneg %p211
        %p485 = pneg %p208
        %s486 = sand.u32 %s224, 1
        %s487 = scalar_lea.sflag [#allocation10], %s486
        %s488 = sand.u32 %s224, 1
        %s489 = smul.addr %s488, 64
        %s490 = scalar_lea.vmem [#allocation9], %s489
        %p491 = pneg %p237
        %p492 = pneg %p234
        %p493 = scmp.lt.s32.totalorder %s28, 1
        %s494 = scalar_select %p493, %s28, 1
        %s495 = smul.addr %s494, 16
        %s496 = smul.addr %s495, 4
        %s497 = scalar_lea.vmem %s9, %s496
        %p498 = pneg %p263
        %p499 = pneg %p260
        %p500 = pneg %p284
        %p501 = pneg %p281
        %p502 = pneg %p305
        %p503 = pneg %p302
        %p504 = scmp.lt.s32.totalorder %s28, 1
        %s505 = scalar_select %p504, %s28, 1
        %s506 = scalar_lea.vmem %s4, %s505
        %p507 = scmp.lt.s32.totalorder %s28, 1
        %s508 = scalar_select %p507, %s28, 1
        %s509 = smul.addr %s508, 16
        %s510 = smul.addr %s509, 4
        %s511 = scalar_lea.vmem %s5, %s510
        %p512 = scmp.lt.s32.totalorder %s28, 1
        %s513 = scalar_select %p512, %s28, 1
        %s514 = smul.addr %s513, 8
        %s515 = smul.addr %s514, 4
        %s516 = scalar_lea.vmem %s6, %s515
        %p517 = scmp.lt.s32.totalorder %s28, 1
        %s518 = scalar_select %p517, %s28, 1
        %s519 = scalar_lea.vmem %s7, %s518
        %p520 = scmp.lt.s32.totalorder %s28, 1
        %s521 = scalar_select %p520, %s28, 1
        %s522 = smul.addr %s521, 16
        %s523 = smul.addr %s522, 4
        %s524 = scalar_lea.vmem %s9, %s523
        %p526 = scmp.eq.s32.totalorder %s28, 0
        // Predicated region
        $region81: #{tpu_custom_call.1} parent=63 // pred_check
          %p527 = pneg %p526
        $region82: #{tpu_custom_call.1} parent=63 // pred_check_branch
          %529 = sbr.rel (%p527) target = $region84
        $region83: #{tpu_custom_call.1} parent=63 // pred_region
          %v530 = vld [vmem:[%s0] sm:$0xff]
          %v531 = vld [vmem:[%s0 + $0x8] sm:$0xff]
          %vm532 = vcmask 523264
          %533 = vst.msk [vmem:[#allocation2] sm:$0xff] %vm532, %v530
          %534 = vst.msk [vmem:[#allocation2 + $0x8] sm:$0xff] %vm532, %v531
        $region84: #{tpu_custom_call.1} parent=63 // pred_fallthru
          _
        %v535 = vld [vmem:[#allocation2] sm:$0xff]
        %v536 = vld [vmem:[#allocation2 + $0x8] sm:$0xff]
        %v537 = vld [vmem:[#allocation3] sm:$0xff]
        %v538 = vld [vmem:[#allocation3 + $0x8] sm:$0xff]
        %v539 = vld [vmem:[#allocation3 + $0x10] sm:$0xff]
        %v540 = vld [vmem:[#allocation3 + $0x18] sm:$0xff]
        %v541 = vld [vmem:[#allocation6] sm:$0xff]
        %v542 = vld [vmem:[#allocation6 + $0x8] sm:$0xff]
        %v543 = vld [vmem:[#allocation8] sm:$0xff]
        %v544 = vld [vmem:[#allocation8 + $0x8] sm:$0xff]
        %v545 = vld [vmem:[%s506] sm:$0x1]
        %v546 = vmul.f32 %v535, %v535
        %v547 = vmul.f32 %v536, %v536
        %vm548 = vcmask 523264
        %v549 = vsel %vm548, %v546, 0.0
        %550 = vadd.xlane.f32.xlu0 %v549
        %v551 = vpop.xlane.xlu0 %550
        %v552 = vsel %vm548, %v547, 0.0
        %553 = vadd.xlane.f32.xlu0 %v552
        %v554 = vpop.xlane.xlu0 %553
        %v555 = vrcp.pop 64.0
        %v556 = vmul.f32 %v551, %v555
        %v557 = vmul.f32 %v554, %v555
        %v558 = vadd.f32 %v556, 1e-06
        %v559 = vadd.f32 %v557, 1e-06
        %v560 = vrsqrt.pop %v558
        %v561 = vrsqrt.pop %v559
        %v562 = vmul.f32 %v535, %v560
        %v563 = vmul.f32 %v536, %v561
        %v564 = vadd.f32 %v545, 1.0
        %v566 = vlaneseq
        %v567 = vshrl.u32 %v566, 7
        %v568 = vsub.s32 0, %v567
        %v569 = vrot.slane %v564, %v568
        %v571 = vmul.f32 %v562, %v569
        %v572 = vmul.f32 %v563, %v569
        %v573 = vpack.c.bf16 %v572, %v571
        %v574 = vld [vmem:[%s511] sm:$0xff]
        %v575 = vld [vmem:[%s511 + $0x8] sm:$0xff]
        %v576 = vld [vmem:[%s511 + $0x10] sm:$0xff]
        %v577 = vld [vmem:[%s511 + $0x18] sm:$0xff]
        %v578 = vld [vmem:[%s511 + $0x20] sm:$0xff]
        %v579 = vld [vmem:[%s511 + $0x28] sm:$0xff]
        %v580 = vld [vmem:[%s511 + $0x30] sm:$0xff]
        %v581 = vld [vmem:[%s511 + $0x38] sm:$0xff]
        %v590 = vunpack.c.l.b16 %v574
        %v591 = vunpack.c.h.b16 %v574
        %v592 = vunpack.c.l.b16 %v575
        %v593 = vunpack.c.h.b16 %v575
        %v594 = vunpack.c.l.b16 %v576
        %v595 = vunpack.c.h.b16 %v576
        %v596 = vunpack.c.l.b16 %v577
        %v597 = vunpack.c.h.b16 %v577
        %v598 = vunpack.c.l.b16 %v578
        %v599 = vunpack.c.h.b16 %v578
        %v600 = vunpack.c.l.b16 %v579
        %v601 = vunpack.c.h.b16 %v579
        %v602 = vunpack.c.l.b16 %v580
        %v603 = vunpack.c.h.b16 %v580
        %v604 = vunpack.c.l.b16 %v581
        %v605 = vunpack.c.h.b16 %v581
        %v606 = vpack.c.b16 %v592, %v590
        %v607 = vpack.c.b16 %v593, %v591
        %v608 = vpack.c.b16 %v596, %v594
        %v609 = vpack.c.b16 %v597, %v595
        %v610 = vpack.c.b16 %v600, %v598
        %v611 = vpack.c.b16 %v601, %v599
        %v612 = vpack.c.b16 %v604, %v602
        %v613 = vpack.c.b16 %v605, %v603
        %v623 = vsel %vm548, %v573, 0
        %625 = vmatprep.subr.bf16.mxu0 %v607
        %626 = vmatpush1.bf16.msra.mxu0 %v606
        %627 = vmatprep.subr.bf16.mxu0 %v609
        %628 = vmatpush1.bf16.msra.mxu0 %v608
        %629 = vmatprep.subr.bf16.mxu0 %v611
        %630 = vmatpush1.bf16.msra.mxu0 %v610
        %631 = vmatprep.subr.bf16.mxu0 %v613
        %632 = vmatpush1.bf16.msra.mxu0 %v612
        %633 = vmatprep.subr.bf16.mxu0 0
        %634 = vmatpush1.bf16.msra.mxu0 0
        %635 = vmatprep.subr.bf16.mxu0 0
        %636 = vmatpush1.bf16.msra.mxu0 0
        %637 = vmatprep.subr.bf16.mxu0 0
        %638 = vmatpush1.bf16.msra.mxu0 0
        %639 = vmatprep.subr.bf16.mxu0 0
        %640 = vmatpush1.bf16.msra.mxu0 0
        %641 = vmatprep.subr.bf16.mxu0 0
        %642 = vmatpush1.bf16.msra.mxu0 0
        %643 = vmatprep.subr.bf16.mxu0 0
        %644 = vmatpush1.bf16.msra.mxu0 0
        %645 = vmatprep.subr.bf16.mxu0 0
        %646 = vmatpush1.bf16.msra.mxu0 0
        %647 = vmatprep.subr.bf16.mxu0 0
        %648 = vmatpush1.bf16.msra.mxu0 0
        %649 = vmatprep.subr.bf16.mxu0 0
        %650 = vmatpush1.bf16.msra.mxu0 0
        %651 = vmatprep.subr.bf16.mxu0 0
        %652 = vmatpush1.bf16.msra.mxu0 0
        %653 = vmatprep.subr.bf16.mxu0 0
        %654 = vmatpush1.bf16.msra.mxu0 0
        %655 = vmatprep.subr.bf16.mxu0 0
        %656 = vmatpush1.bf16.msra.mxu0 0
        %657 = vmatprep.mubr.bf16.mxu0 0
        %658 = vmatmul.mubr.bf16.gmra.mrb[0].mxu0 %v623
        %v659 = vpop.f32.mrb[0].mxu0
        %v660 = vadd.f32 0.0, %v659
        %v661 = vpop.f32.mrb[0].mxu0
        %v662 = vadd.f32 0.0, %v661
        %v663 = vpop.f32.mrb[0].mxu0
        %v664 = vadd.f32 0.0, %v663
        %v665 = vpop.f32.mrb[0].mxu0
        %v666 = vadd.f32 0.0, %v665
        %667 = vdwg.mxu0
        %v668 = vsub.f32 0.0, %v660
        %v669 = vsub.f32 0.0, %v664
        %v670 = vmul.f32 %v660, %v541
        %v671 = vmul.f32 %v664, %v542
        %674 = vrot.lane.b32.xlu0 %v668, 112
        %v675 = vpop.permute.xlu0 %674
        %676 = vrot.lane.b32.xlu0 %v669, 112
        %v677 = vpop.permute.xlu0 %676
        %682 = vrot.lane.b32.xlu0 %v660, 16
        %v683 = vpop.permute.xlu0 %682
        %684 = vrot.lane.b32.xlu0 %v664, 16
        %v685 = vpop.permute.xlu0 %684
        %vm688 = vcmask 130048
        %v689 = vsel %vm688, %v675, %v683
        %v690 = vsel %vm688, %v677, %v685
        %vm691 = vcmask 261120
        %v692 = vsel %vm691, %v689, %v675
        %v693 = vsel %vm691, %v690, %v677
        %vm694 = vcmask 392192
        %v695 = vsel %vm694, %v692, %v683
        %v696 = vsel %vm694, %v693, %v685
        %v697 = vmul.f32 %v695, %v543
        %v698 = vmul.f32 %v696, %v544
        %v699 = vadd.f32 %v670, %v697
        %v700 = vadd.f32 %v671, %v698
        %703 = vrot.lane.b32.xlu0 %v541, 64
        %v704 = vpop.permute.xlu0 %703
        %705 = vrot.lane.b32.xlu0 %v542, 64
        %v706 = vpop.permute.xlu0 %705
        %v709 = vmul.f32 %v660, %v704
        %v710 = vmul.f32 %v664, %v706
        %711 = vrot.lane.b32.xlu0 %v668, 48
        %v712 = vpop.permute.xlu0 %711
        %713 = vrot.lane.b32.xlu0 %v669, 48
        %v714 = vpop.permute.xlu0 %713
        %717 = vrot.lane.b32.xlu0 %v660, 80
        %v718 = vpop.permute.xlu0 %717
        %719 = vrot.lane.b32.xlu0 %v664, 80
        %v720 = vpop.permute.xlu0 %719
        %v723 = vsel %vm688, %v712, %v718
        %v724 = vsel %vm688, %v714, %v720
        %v725 = vsel %vm691, %v723, %v712
        %v726 = vsel %vm691, %v724, %v714
        %v727 = vsel %vm694, %v725, %v718
        %v728 = vsel %vm694, %v726, %v720
        %v729 = vmul.f32 %v727, %v543
        %v730 = vmul.f32 %v728, %v544
        %733 = vrot.lane.b32.xlu0 %v729, 64
        %v734 = vpop.permute.xlu0 %733
        %735 = vrot.lane.b32.xlu0 %v730, 64
        %v736 = vpop.permute.xlu0 %735
        %v739 = vadd.f32 %v709, %v734
        %v740 = vadd.f32 %v710, %v736
        %743 = vrot.lane.b32.xlu0 %v699, 96
        %v744 = vpop.permute.xlu0 %743
        %745 = vrot.lane.b32.xlu0 %v700, 96
        %v746 = vpop.permute.xlu0 %745
        %v749 = vpack.c.bf16 %v700, %v699
        %v750 = vpack.c.bf16 %v746, %v744
        %753 = vrot.lane.b32.xlu0 %v739, 96
        %v754 = vpop.permute.xlu0 %753
        %755 = vrot.lane.b32.xlu0 %v740, 96
        %v756 = vpop.permute.xlu0 %755
        %v759 = vpack.c.bf16 %v740, %v739
        %v760 = vpack.c.bf16 %v756, %v754
        %763 = vrot.lane.b32.xlu0 %v662, 96
        %v764 = vpop.permute.xlu0 %763
        %765 = vrot.lane.b32.xlu0 %v666, 96
        %v766 = vpop.permute.xlu0 %765
        %v769 = vpack.c.bf16 %v666, %v662
        %v770 = vpack.c.bf16 %v766, %v764
        %773 = vrot.lane.b32.xlu0 %v759, 64
        %v774 = vpop.permute.xlu0 %773
        %775 = vrot.lane.b32.xlu0 %v760, 64
        %v776 = vpop.permute.xlu0 %775
        %v778 = vsel %vm691, %v749, 0
        %v781 = vsel %vm691, %v750, 0
        %v784 = vsel %vm691, %v774, 0
        %v787 = vsel %vm691, %v776, 0
        %789 = vmatprep.subr.bf16.mxu0 0
        %790 = vmatpush1.bf16.xpose.msra.mxu0 %v784
        %791 = vmatprep.subr.bf16.mxu0 0
        %792 = vmatpush1.bf16.xpose.msra.mxu0 %v787
        %793 = vmatprep.subr.bf16.mxu0 0
        %794 = vmatpush1.bf16.xpose.msra.mxu0 0
        %795 = vmatprep.subr.bf16.mxu0 0
        %796 = vmatpush1.bf16.xpose.msra.mxu0 0
        %797 = vmatprep.subr.bf16.mxu0 0
        %798 = vmatpush1.bf16.xpose.msra.mxu0 0
        %799 = vmatprep.subr.bf16.mxu0 0
        %800 = vmatpush1.bf16.xpose.msra.mxu0 0
        %801 = vmatprep.subr.bf16.mxu0 0
        %802 = vmatpush1.bf16.xpose.msra.mxu0 0
        %803 = vmatprep.subr.bf16.mxu0 0
        %804 = vmatpush1.bf16.xpose.msra.mxu0 0
        %805 = vmatprep.subr.bf16.mxu0 0
        %806 = vmatpush1.bf16.xpose.msra.mxu0 0
        %807 = vmatprep.subr.bf16.mxu0 0
        %808 = vmatpush1.bf16.xpose.msra.mxu0 0
        %809 = vmatprep.subr.bf16.mxu0 0
        %810 = vmatpush1.bf16.xpose.msra.mxu0 0
        %811 = vmatprep.subr.bf16.mxu0 0
        %812 = vmatpush1.bf16.xpose.msra.mxu0 0
        %813 = vmatprep.subr.bf16.mxu0 0
        %814 = vmatpush1.bf16.xpose.msra.mxu0 0
        %815 = vmatprep.subr.bf16.mxu0 0
        %816 = vmatpush1.bf16.xpose.msra.mxu0 0
        %817 = vmatprep.subr.bf16.mxu0 0
        %818 = vmatpush1.bf16.xpose.msra.mxu0 0
        %819 = vmatprep.subr.bf16.mxu0 0
        %820 = vmatpush1.bf16.xpose.msra.mxu0 0
        %821 = vmatprep.mubr.bf16.mxu0 0
        %822 = vmatmul.mubr.bf16.gmra.mrb[0].mxu0 %v778
        %v823 = vpop.f32.mrb[0].mxu0
        %v824 = vadd.f32 %v537, %v823
        %v825 = vpop.f32.mrb[0].mxu0
        %v826 = vpop.f32.mrb[0].mxu0
        %v827 = vadd.f32 %v538, %v826
        %v828 = vpop.f32.mrb[0].mxu0
        %829 = vmatprep.mubr.bf16.mxu0 0
        %830 = vmatmul.mubr.bf16.gmra.mrb[0].mxu0 %v781
        %v831 = vpop.f32.mrb[0].mxu0
        %v832 = vadd.f32 %v539, %v831
        %v833 = vpop.f32.mrb[0].mxu0
        %v834 = vpop.f32.mrb[0].mxu0
        %v835 = vadd.f32 %v540, %v834
        %v836 = vpop.f32.mrb[0].mxu0
        %837 = vdwg.mxu0
        %v838 = vsel %vm691, %v824, -inf
        %839 = vmax.xlane.f32.xlu0 %v838
        %v840 = vpop.xlane.xlu0 %839
        %v841 = vsel %vm691, %v827, -inf
        %842 = vmax.xlane.f32.xlu0 %v841
        %v843 = vpop.xlane.xlu0 %842
        %v844 = vsel %vm691, %v832, -inf
        %845 = vmax.xlane.f32.xlu0 %v844
        %v846 = vpop.xlane.xlu0 %845
        %v847 = vsel %vm691, %v835, -inf
        %848 = vmax.xlane.f32.xlu0 %v847
        %v849 = vpop.xlane.xlu0 %848
        %v850 = vsub.f32 %v824, %v840
        %v851 = vsub.f32 %v827, %v843
        %v852 = vsub.f32 %v832, %v846
        %v853 = vsub.f32 %v835, %v849
        %v854 = vmul.f32 %v850, 1.442695
        %v855 = vpow.pop %v854
        %v856 = vmul.f32 %v851, 1.442695
        %v857 = vpow.pop %v856
        %v858 = vmul.f32 %v852, 1.442695
        %v859 = vpow.pop %v858
        %v860 = vmul.f32 %v853, 1.442695
        %v861 = vpow.pop %v860
        %v862 = vsel %vm691, %v855, 0.0
        %863 = vadd.xlane.f32.xlu0 %v862
        %v864 = vpop.xlane.xlu0 %863
        %v865 = vsel %vm691, %v857, 0.0
        %866 = vadd.xlane.f32.xlu0 %v865
        %v867 = vpop.xlane.xlu0 %866
        %v868 = vsel %vm691, %v859, 0.0
        %869 = vadd.xlane.f32.xlu0 %v868
        %v870 = vpop.xlane.xlu0 %869
        %v871 = vsel %vm691, %v861, 0.0
        %872 = vadd.xlane.f32.xlu0 %v871
        %v873 = vpop.xlane.xlu0 %872
        %v874 = vrcp.pop %v864
        %v875 = vrcp.pop %v867
        %v876 = vrcp.pop %v870
        %v877 = vrcp.pop %v873
        %v878 = vmul.f32 %v855, %v874
        %v879 = vmul.f32 %v857, %v875
        %v880 = vmul.f32 %v859, %v876
        %v881 = vmul.f32 %v861, %v877
        %v882 = vpack.c.bf16 %v879, %v878
        %v883 = vpack.c.bf16 %v881, %v880
        %v885 = vsel %vm691, %v882, 0
        %v888 = vsel %vm691, %v883, 0
        %890 = vmatprep.subr.bf16.mxu0 0
        %891 = vmatpush1.bf16.msra.mxu0 %v769
        %892 = vmatprep.subr.bf16.mxu0 0
        %893 = vmatpush1.bf16.msra.mxu0 %v770
        %894 = vmatprep.subr.bf16.mxu0 0
        %895 = vmatpush1.bf16.msra.mxu0 0
        %896 = vmatprep.subr.bf16.mxu0 0
        %897 = vmatpush1.bf16.msra.mxu0 0
        %898 = vmatprep.subr.bf16.mxu0 0
        %899 = vmatpush1.bf16.msra.mxu0 0
        %900 = vmatprep.subr.bf16.mxu0 0
        %901 = vmatpush1.bf16.msra.mxu0 0
        %902 = vmatprep.subr.bf16.mxu0 0
        %903 = vmatpush1.bf16.msra.mxu0 0
        %904 = vmatprep.subr.bf16.mxu0 0
        %905 = vmatpush1.bf16.msra.mxu0 0
        %906 = vmatprep.subr.bf16.mxu0 0
        %907 = vmatpush1.bf16.msra.mxu0 0
        %908 = vmatprep.subr.bf16.mxu0 0
        %909 = vmatpush1.bf16.msra.mxu0 0
        %910 = vmatprep.subr.bf16.mxu0 0
        %911 = vmatpush1.bf16.msra.mxu0 0
        %912 = vmatprep.subr.bf16.mxu0 0
        %913 = vmatpush1.bf16.msra.mxu0 0
        %914 = vmatprep.subr.bf16.mxu0 0
        %915 = vmatpush1.bf16.msra.mxu0 0
        %916 = vmatprep.subr.bf16.mxu0 0
        %917 = vmatpush1.bf16.msra.mxu0 0
        %918 = vmatprep.subr.bf16.mxu0 0
        %919 = vmatpush1.bf16.msra.mxu0 0
        %920 = vmatprep.subr.bf16.mxu0 0
        %921 = vmatpush1.bf16.msra.mxu0 0
        %922 = vmatprep.mubr.bf16.mxu0 0
        %923 = vmatmul.mubr.bf16.gmra.mrb[0].mxu0 %v885
        %v924 = vpop.f32.mrb[0].mxu0
        %v925 = vadd.f32 0.0, %v924
        %v926 = vpop.f32.mrb[0].mxu0
        %v927 = vpop.f32.mrb[0].mxu0
        %v928 = vadd.f32 0.0, %v927
        %v929 = vpop.f32.mrb[0].mxu0
        %930 = vmatprep.mubr.bf16.mxu0 0
        %931 = vmatmul.mubr.bf16.gmra.mrb[0].mxu0 %v888
        %v932 = vpop.f32.mrb[0].mxu0
        %v933 = vadd.f32 0.0, %v932
        %v934 = vpop.f32.mrb[0].mxu0
        %v935 = vpop.f32.mrb[0].mxu0
        %v936 = vadd.f32 0.0, %v935
        %v937 = vpop.f32.mrb[0].mxu0
        %938 = vdwg.mxu0
        %941 = vrot.lane.b32.xlu0 %v933, 32
        %v942 = vpop.permute.xlu0 %941
        %943 = vrot.lane.b32.xlu0 %v936, 32
        %v944 = vpop.permute.xlu0 %943
        %v947 = vsel %vm691, %v925, %v942
        %v948 = vsel %vm691, %v928, %v944
        %v949 = vpack.c.bf16 %v948, %v947
        %v950 = vld [vmem:[%s516] sm:$0xf]
        %v951 = vld [vmem:[%s516 + $0x4] sm:$0xf]
        %v952 = vld [vmem:[%s516 + $0x8] sm:$0xf]
        %v953 = vld [vmem:[%s516 + $0xc] sm:$0xf]
        %v954 = vld [vmem:[%s516 + $0x10] sm:$0xf]
        %v955 = vld [vmem:[%s516 + $0x14] sm:$0xf]
        %v956 = vld [vmem:[%s516 + $0x18] sm:$0xf]
        %v957 = vld [vmem:[%s516 + $0x1c] sm:$0xf]
        %v966 = vunpack.c.l.b16 %v950
        %v967 = vunpack.c.l.b16 %v951
        %v968 = vunpack.c.l.b16 %v952
        %v969 = vunpack.c.l.b16 %v953
        %v970 = vunpack.c.l.b16 %v954
        %v971 = vunpack.c.l.b16 %v955
        %v972 = vunpack.c.l.b16 %v956
        %v973 = vunpack.c.l.b16 %v957
        %v974 = vpack.c.b16 %v967, %v966
        %v975 = vpack.c.b16 %v969, %v968
        %v976 = vpack.c.b16 %v971, %v970
        %v977 = vpack.c.b16 %v973, %v972
        %v983 = vsel %vm548, %v949, 0
        %985 = vmatprep.subr.bf16.mxu0 0
        %986 = vmatpush1.bf16.msra.mxu0 %v974
        %987 = vmatprep.subr.bf16.mxu0 0
        %988 = vmatpush1.bf16.msra.mxu0 %v975
        %989 = vmatprep.subr.bf16.mxu0 0
        %990 = vmatpush1.bf16.msra.mxu0 %v976
        %991 = vmatprep.subr.bf16.mxu0 0
        %992 = vmatpush1.bf16.msra.mxu0 %v977
        %993 = vmatprep.subr.bf16.mxu0 0
        %994 = vmatpush1.bf16.msra.mxu0 0
        %995 = vmatprep.subr.bf16.mxu0 0
        %996 = vmatpush1.bf16.msra.mxu0 0
        %997 = vmatprep.subr.bf16.mxu0 0
        %998 = vmatpush1.bf16.msra.mxu0 0
        %999 = vmatprep.subr.bf16.mxu0 0
        %1000 = vmatpush1.bf16.msra.mxu0 0
        %1001 = vmatprep.subr.bf16.mxu0 0
        %1002 = vmatpush1.bf16.msra.mxu0 0
        %1003 = vmatprep.subr.bf16.mxu0 0
        %1004 = vmatpush1.bf16.msra.mxu0 0
        %1005 = vmatprep.subr.bf16.mxu0 0
        %1006 = vmatpush1.bf16.msra.mxu0 0
        %1007 = vmatprep.subr.bf16.mxu0 0
        %1008 = vmatpush1.bf16.msra.mxu0 0
        %1009 = vmatprep.subr.bf16.mxu0 0
        %1010 = vmatpush1.bf16.msra.mxu0 0
        %1011 = vmatprep.subr.bf16.mxu0 0
        %1012 = vmatpush1.bf16.msra.mxu0 0
        %1013 = vmatprep.subr.bf16.mxu0 0
        %1014 = vmatpush1.bf16.msra.mxu0 0
        %1015 = vmatprep.subr.bf16.mxu0 0
        %1016 = vmatpush1.bf16.msra.mxu0 0
        %1017 = vmatprep.mubr.bf16.mxu0 0
        %1018 = vmatmul.mubr.bf16.gmra.mrb[0].mxu0 %v983
        %v1019 = vpop.f32.mrb[0].mxu0
        %v1020 = vadd.f32 0.0, %v1019
        %v1021 = vpop.f32.mrb[0].mxu0
        %v1022 = vpop.f32.mrb[0].mxu0
        %v1023 = vadd.f32 0.0, %v1022
        %v1024 = vpop.f32.mrb[0].mxu0
        %1025 = vdwg.mxu0
        %v1026 = vadd.f32 %v535, %v1020
        %v1027 = vadd.f32 %v536, %v1023
        %v1028 = vld [vmem:[%s519] sm:$0x1]
        %v1029 = vmul.f32 %v1026, %v1026
        %v1030 = vmul.f32 %v1027, %v1027
        %v1031 = vsel %vm548, %v1029, 0.0
        %1032 = vadd.xlane.f32.xlu0 %v1031
        %v1033 = vpop.xlane.xlu0 %1032
        %v1034 = vsel %vm548, %v1030, 0.0
        %1035 = vadd.xlane.f32.xlu0 %v1034
        %v1036 = vpop.xlane.xlu0 %1035
        %v1037 = vmul.f32 %v1033, %v555
        %v1038 = vmul.f32 %v1036, %v555
        %v1039 = vadd.f32 %v1037, 1e-06
        %v1040 = vadd.f32 %v1038, 1e-06
        %v1041 = vrsqrt.pop %v1039
        %v1042 = vrsqrt.pop %v1040
        %v1043 = vmul.f32 %v1026, %v1041
        %v1044 = vmul.f32 %v1027, %v1042
        %v1045 = vadd.f32 %v1028, 1.0
        %v1047 = vlaneseq
        %v1048 = vshrl.u32 %v1047, 7
        %v1049 = vsub.s32 0, %v1048
        %v1050 = vrot.slane %v1045, %v1049
        %v1052 = vmul.f32 %v1043, %v1050
        %v1053 = vmul.f32 %v1044, %v1050
        %v1054 = vpack.c.bf16 %v1053, %v1052
        %v1055 = vld [vmem:[%s449] sm:$0xff]
        %v1056 = vld [vmem:[%s449 + $0x8] sm:$0xff]
        %v1057 = vld [vmem:[%s449 + $0x10] sm:$0xff]
        %v1058 = vld [vmem:[%s449 + $0x18] sm:$0xff]
        %v1059 = vld [vmem:[%s449 + $0x20] sm:$0xff]
        %v1060 = vld [vmem:[%s449 + $0x28] sm:$0xff]
        %v1061 = vld [vmem:[%s449 + $0x30] sm:$0xff]
        %v1062 = vld [vmem:[%s449 + $0x38] sm:$0xff]
        %v1071 = vunpack.c.l.b16 %v1055
        %v1072 = vunpack.c.h.b16 %v1055
        %v1073 = vunpack.c.l.b16 %v1056
        %v1074 = vunpack.c.h.b16 %v1056
        %v1075 = vunpack.c.l.b16 %v1057
        %v1076 = vunpack.c.h.b16 %v1057
        %v1077 = vunpack.c.l.b16 %v1058
        %v1078 = vunpack.c.h.b16 %v1058
        %v1079 = vunpack.c.l.b16 %v1059
        %v1080 = vunpack.c.h.b16 %v1059
        %v1081 = vunpack.c.l.b16 %v1060
        %v1082 = vunpack.c.h.b16 %v1060
        %v1083 = vunpack.c.l.b16 %v1061
        %v1084 = vunpack.c.h.b16 %v1061
        %v1085 = vunpack.c.l.b16 %v1062
        %v1086 = vunpack.c.h.b16 %v1062
        %v1087 = vpack.c.b16 %v1073, %v1071
        %v1088 = vpack.c.b16 %v1074, %v1072
        %v1089 = vpack.c.b16 %v1077, %v1075
        %v1090 = vpack.c.b16 %v1078, %v1076
        %v1091 = vpack.c.b16 %v1081, %v1079
        %v1092 = vpack.c.b16 %v1082, %v1080
        %v1093 = vpack.c.b16 %v1085, %v1083
        %v1094 = vpack.c.b16 %v1086, %v1084
        %v1104 = vsel %vm548, %v1054, 0
        %1106 = vmatprep.subr.bf16.mxu0 %v1088
        %1107 = vmatpush1.bf16.msra.mxu0 %v1087
        %1108 = vmatprep.subr.bf16.mxu0 %v1090
        %1109 = vmatpush1.bf16.msra.mxu0 %v1089
        %1110 = vmatprep.subr.bf16.mxu0 %v1092
        %1111 = vmatpush1.bf16.msra.mxu0 %v1091
        %1112 = vmatprep.subr.bf16.mxu0 %v1094
        %1113 = vmatpush1.bf16.msra.mxu0 %v1093
        %1114 = vmatprep.subr.bf16.mxu0 0
        %1115 = vmatpush1.bf16.msra.mxu0 0
        %1116 = vmatprep.subr.bf16.mxu0 0
        %1117 = vmatpush1.bf16.msra.mxu0 0
        %1118 = vmatprep.subr.bf16.mxu0 0
        %1119 = vmatpush1.bf16.msra.mxu0 0
        %1120 = vmatprep.subr.bf16.mxu0 0
        %1121 = vmatpush1.bf16.msra.mxu0 0
        %1122 = vmatprep.subr.bf16.mxu0 0
        %1123 = vmatpush1.bf16.msra.mxu0 0
        %1124 = vmatprep.subr.bf16.mxu0 0
        %1125 = vmatpush1.bf16.msra.mxu0 0
        %1126 = vmatprep.subr.bf16.mxu0 0
        %1127 = vmatpush1.bf16.msra.mxu0 0
        %1128 = vmatprep.subr.bf16.mxu0 0
        %1129 = vmatpush1.bf16.msra.mxu0 0
        %1130 = vmatprep.subr.bf16.mxu0 0
        %1131 = vmatpush1.bf16.msra.mxu0 0
        %1132 = vmatprep.subr.bf16.mxu0 0
        %1133 = vmatpush1.bf16.msra.mxu0 0
        %1134 = vmatprep.subr.bf16.mxu0 0
        %1135 = vmatpush1.bf16.msra.mxu0 0
        %1136 = vmatprep.subr.bf16.mxu0 0
        %1137 = vmatpush1.bf16.msra.mxu0 0
        %1138 = vmatprep.mubr.bf16.mxu0 0
        %1139 = vmatmul.mubr.bf16.gmra.mrb[0].mxu0 %v1104
        %v1140 = vpop.f32.mrb[0].mxu0
        %v1141 = vadd.f32 0.0, %v1140
        %v1142 = vpop.f32.mrb[0].mxu0
        %v1143 = vadd.f32 0.0, %v1142
        %v1144 = vpop.f32.mrb[0].mxu0
        %v1145 = vadd.f32 0.0, %v1144
        %v1146 = vpop.f32.mrb[0].mxu0
        %v1147 = vadd.f32 0.0, %v1146
        %1148 = vdwg.mxu0
        %v1149 = vmul.f32 %v1141, %v1141
        %v1150 = vmul.f32 %v1145, %v1145
        %v1151 = vmul.f32 %v1141, %v1149
        %v1152 = vmul.f32 %v1145, %v1150
        %v1153 = vmul.f32 %v1151, 0.044715
        %v1154 = vmul.f32 %v1152, 0.044715
        %v1155 = vadd.f32 %v1141, %v1153
        %v1156 = vadd.f32 %v1145, %v1154
        %v1157 = vmul.f32 %v1155, 0.7978846
        %v1158 = vmul.f32 %v1156, 0.7978846
        %v1159 = vtanh.pop %v1157
        %v1160 = vtanh.pop %v1158
        %v1161 = vadd.f32 %v1159, 1.0
        %v1162 = vadd.f32 %v1160, 1.0
        %v1163 = vmul.f32 %v1161, 0.5
        %v1164 = vmul.f32 %v1162, 0.5
        %v1165 = vmul.f32 %v1141, %v1163
        %v1166 = vmul.f32 %v1145, %v1164
        %v1167 = vmul.f32 %v1165, %v1143
        %v1168 = vmul.f32 %v1166, %v1147
        %v1169 = vpack.c.bf16 %v1168, %v1167
        %v1170 = vld [vmem:[%s524] sm:$0xf]
        %v1171 = vld [vmem:[%s524 + $0x4] sm:$0xf]
        %v1172 = vld [vmem:[%s524 + $0x8] sm:$0xf]
        %v1173 = vld [vmem:[%s524 + $0xc] sm:$0xf]
        %v1174 = vld [vmem:[%s524 + $0x10] sm:$0xf]
        %v1175 = vld [vmem:[%s524 + $0x14] sm:$0xf]
        %v1176 = vld [vmem:[%s524 + $0x18] sm:$0xf]
        %v1177 = vld [vmem:[%s524 + $0x1c] sm:$0xf]
        %v1178 = vld [vmem:[%s524 + $0x20] sm:$0xf]
        %v1179 = vld [vmem:[%s524 + $0x24] sm:$0xf]
        %v1180 = vld [vmem:[%s524 + $0x28] sm:$0xf]
        %v1181 = vld [vmem:[%s524 + $0x2c] sm:$0xf]
        %v1182 = vld [vmem:[%s524 + $0x30] sm:$0xf]
        %v1183 = vld [vmem:[%s524 + $0x34] sm:$0xf]
        %v1184 = vld [vmem:[%s524 + $0x38] sm:$0xf]
        %v1185 = vld [vmem:[%s524 + $0x3c] sm:$0xf]
        %v1202 = vunpack.c.l.b16 %v1170
        %v1203 = vunpack.c.l.b16 %v1171
        %v1204 = vunpack.c.l.b16 %v1172
        %v1205 = vunpack.c.l.b16 %v1173
        %v1206 = vunpack.c.l.b16 %v1174
        %v1207 = vunpack.c.l.b16 %v1175
        %v1208 = vunpack.c.l.b16 %v1176
        %v1209 = vunpack.c.l.b16 %v1177
        %v1210 = vunpack.c.l.b16 %v1178
        %v1211 = vunpack.c.l.b16 %v1179
        %v1212 = vunpack.c.l.b16 %v1180
        %v1213 = vunpack.c.l.b16 %v1181
        %v1214 = vunpack.c.l.b16 %v1182
        %v1215 = vunpack.c.l.b16 %v1183
        %v1216 = vunpack.c.l.b16 %v1184
        %v1217 = vunpack.c.l.b16 %v1185
        %v1218 = vpack.c.b16 %v1203, %v1202
        %v1219 = vpack.c.b16 %v1205, %v1204
        %v1220 = vpack.c.b16 %v1207, %v1206
        %v1221 = vpack.c.b16 %v1209, %v1208
        %v1222 = vpack.c.b16 %v1211, %v1210
        %v1223 = vpack.c.b16 %v1213, %v1212
        %v1224 = vpack.c.b16 %v1215, %v1214
        %v1225 = vpack.c.b16 %v1217, %v1216
        %1234 = vmatprep.subr.bf16.mxu0 0
        %1235 = vmatpush1.bf16.msra.mxu0 %v1218
        %1236 = vmatprep.subr.bf16.mxu0 0
        %1237 = vmatpush1.bf16.msra.mxu0 %v1219
        %1238 = vmatprep.subr.bf16.mxu0 0
        %1239 = vmatpush1.bf16.msra.mxu0 %v1220
        %1240 = vmatprep.subr.bf16.mxu0 0
        %1241 = vmatpush1.bf16.msra.mxu0 %v1221
        %1242 = vmatprep.subr.bf16.mxu0 0
        %1243 = vmatpush1.bf16.msra.mxu0 %v1222
        %1244 = vmatprep.subr.bf16.mxu0 0
        %1245 = vmatpush1.bf16.msra.mxu0 %v1223
        %1246 = vmatprep.subr.bf16.mxu0 0
        %1247 = vmatpush1.bf16.msra.mxu0 %v1224
        %1248 = vmatprep.subr.bf16.mxu0 0
        %1249 = vmatpush1.bf16.msra.mxu0 %v1225
        %1250 = vmatprep.subr.bf16.mxu0 0
        %1251 = vmatpush1.bf16.msra.mxu0 0
        %1252 = vmatprep.subr.bf16.mxu0 0
        %1253 = vmatpush1.bf16.msra.mxu0 0
        %1254 = vmatprep.subr.bf16.mxu0 0
        %1255 = vmatpush1.bf16.msra.mxu0 0
        %1256 = vmatprep.subr.bf16.mxu0 0
        %1257 = vmatpush1.bf16.msra.mxu0 0
        %1258 = vmatprep.subr.bf16.mxu0 0
        %1259 = vmatpush1.bf16.msra.mxu0 0
        %1260 = vmatprep.subr.bf16.mxu0 0
        %1261 = vmatpush1.bf16.msra.mxu0 0
        %1262 = vmatprep.subr.bf16.mxu0 0
        %1263 = vmatpush1.bf16.msra.mxu0 0
        %1264 = vmatprep.subr.bf16.mxu0 0
        %1265 = vmatpush1.bf16.msra.mxu0 0
        %1266 = vmatprep.mubr.bf16.mxu0 0
        %1267 = vmatmul.mubr.bf16.gmra.mrb[0].mxu0 %v1169
        %v1268 = vpop.f32.mrb[0].mxu0
        %v1269 = vadd.f32 0.0, %v1268
        %v1270 = vpop.f32.mrb[0].mxu0
        %v1271 = vpop.f32.mrb[0].mxu0
        %v1272 = vadd.f32 0.0, %v1271
        %v1273 = vpop.f32.mrb[0].mxu0
        %1274 = vdwg.mxu0
        %v1275 = vadd.f32 %v1026, %v1269
        %v1276 = vadd.f32 %v1027, %v1272
        %1277 = vst.msk [vmem:[#allocation2] sm:$0xff] %vm548, %v1275
        %1278 = vst.msk [vmem:[#allocation2 + $0x8] sm:$0xff] %vm548, %v1276
        %p1279 = scmp.eq.s32.totalorder %s28, 1
        // Predicated region
        $region85: #{tpu_custom_call.1} parent=63 // pred_check
          %p1280 = pneg %p1279
        $region86: #{tpu_custom_call.1} parent=63 // pred_check_branch
          %1282 = sbr.rel (%p1280) target = $region88
        $region87: #{tpu_custom_call.1} parent=63 // pred_region
          %v1283 = vld [vmem:[%s10] sm:$0x1]
          %v1284 = vmul.f32 %v1275, %v1275
          %v1285 = vmul.f32 %v1276, %v1276
          %v1286 = vsel %vm548, %v1284, 0.0
          %1287 = vadd.xlane.f32.xlu0 %v1286
          %v1288 = vpop.xlane.xlu0 %1287
          %v1289 = vsel %vm548, %v1285, 0.0
          %1290 = vadd.xlane.f32.xlu0 %v1289
          %v1291 = vpop.xlane.xlu0 %1290
          %v1292 = vmul.f32 %v1288, %v555
          %v1293 = vmul.f32 %v1291, %v555
          %v1294 = vadd.f32 %v1292, 1e-06
          %v1295 = vadd.f32 %v1293, 1e-06
          %v1296 = vrsqrt.pop %v1294
          %v1297 = vrsqrt.pop %v1295
          %v1298 = vmul.f32 %v1275, %v1296
          %v1299 = vmul.f32 %v1276, %v1297
          %v1300 = vadd.f32 %v1283, 1.0
          %v1302 = vlaneseq
          %v1303 = vshrl.u32 %v1302, 7
          %v1304 = vsub.s32 0, %v1303
          %v1305 = vrot.slane %v1300, %v1304
          %v1307 = vmul.f32 %v1298, %v1305
          %v1308 = vmul.f32 %v1299, %v1305
          %1309 = vst.msk [vmem:[#allocation11] sm:$0xff] %vm548, %v1307
          %1310 = vst.msk [vmem:[#allocation11 + $0x8] sm:$0xff] %vm548, %v1308
        $region88: #{tpu_custom_call.1} parent=63 // pred_fallthru
          _
        // Predicated region
        $region89: #{tpu_custom_call.1} parent=63 // pred_check
          %p1311 = pneg %p302
        $region90: #{tpu_custom_call.1} parent=63 // pred_check_branch
          %1313 = sbr.rel (%p1311) target = $region92
        $region91: #{tpu_custom_call.1} parent=63 // pred_region
          %s1315 = ssub.s32 256, 256
          %1316 = vsyncadd [#allocation5], %s1315
          %s1317 = sshll.u32 [#allocation11], 4
          %s1318 = int_to_ptr.vmem [resolvable:$true] %s1317
          %1323 = dma.vmem_to_hbm [thread:$0]  %s1318, 256, %s11, [#allocation5], 128, 128, 8
        $region92: #{tpu_custom_call.1} parent=63 // pred_fallthru
          _
        // Predicated region
        $region93: #{tpu_custom_call.1} parent=63 // pred_check
          %p1324 = pneg %p302
        $region94: #{tpu_custom_call.1} parent=63 // pred_check_branch
          %1326 = sbr.rel (%p1324) target = $region96
        $region95: #{tpu_custom_call.1} parent=63 // pred_region
          %1327 = dma.done [#allocation5], 256
        $region96: #{tpu_custom_call.1} parent=63 // pred_fallthru
          _
      $region64: #{tpu_custom_call.1} parent=5 // pred_fallthru
        _
      %p1328 = scmp.le.s32.totalorder 2, %s23
      // Predicated region
      $region97: #{tpu_custom_call.1} parent=5 // pred_check
        %p1329 = pneg %p1328
      $region98: #{tpu_custom_call.1} parent=5 // pred_check_branch
        %1331 = sbr.rel (%p1329) target = $region100
      $region99: #{tpu_custom_call.1} parent=5 // pred_region
        %s1332 = ssub.s32 %s23, 2
      $region100: #{tpu_custom_call.1} parent=5 // pred_fallthru
        _
    $region6: #{tpu_custom_call.1} parent=1 // loop_footer
      %s27 = sadd.s32 1, %s23
    $region7: #{tpu_custom_call.1} parent=1 // loop_footer_branch
      %22 = sbr.rel target = $region3
    $region8: #{tpu_custom_call.1} parent=1 // loop_exit
      _
    %1333 = vsyncpa [#allocation4], 1
    %s1334 = scalar_lea.sflag [#allocation4], 1
    %1335 = vsyncpa %s1334, 1
    %1336 = vsyncpa [#allocation7], 1
    %1337 = vsyncpa [#allocation10], 1
    %s1338 = scalar_lea.sflag [#allocation10], 1
    %1339 = vsyncpa %s1338, 1
    %1340 = vsyncpa [#allocation5], 1
    %s1341 = scalar_lea.sflag [#allocation5], 1
    %1342 = vsyncpa %s1341, 1

</llo_original>
